<compile_context>
chip_gen: v7x
topology: tpu7x:2x2x1
jax: 0.10.0
libtpu: 0.0.40
codegen_flags: <defaults>
</compile_context>

<pallas_src>
import functools

import jax
import jax.numpy as jnp
from jax.experimental import pallas as pl
from jax.experimental.pallas import tpu as pltpu

IN_FEATURES = 28 * 28          # 784
HIDDEN = 512
OUT_FEATURES = 10
OUT_PADDED = 128               # lane-dense output width


def mlp_kernel(x_ref, w1_ref, b1_ref, w2_ref, b2_ref, w3_ref, b3_ref, o_ref):
    # x: (TB, 784) bf16; w1: (784, 512) bf16; w2: (512, 512) bf16;
    # w3: (512, 128) bf16 (zero past col 10); biases f32; out: (TB, 128) f32.
    x = x_ref[...]
    h1 = jnp.dot(x, w1_ref[...], preferred_element_type=jnp.float32) + b1_ref[...]
    h1 = jnp.maximum(h1, 0.0).astype(jnp.bfloat16)
    h2 = jnp.dot(h1, w2_ref[...], preferred_element_type=jnp.float32) + b2_ref[...]
    h2 = jnp.maximum(h2, 0.0).astype(jnp.bfloat16)
    logits = jnp.dot(h2, w3_ref[...], preferred_element_type=jnp.float32) + b3_ref[...]
    o_ref[...] = logits


def _round_up(n, m):
    return ((n + m - 1) // m) * m


@jax.jit
def neural_network_forward(x, params):
    """x: (B, 1, 28, 28) or (B, 28, 28) float32. Returns (B, 10) f32 logits."""
    w1, b1, w2, b2, w3, b3 = params
    B = x.shape[0]
    x_flat = x.reshape(B, -1)                       # nn.Flatten(): (B, 784)

    # Weights are stored as (in_features, out_features) == W^T of torch nn.Linear.
    # Cast to bf16 (MXU-native); pad the 10-wide last layer to 128 lanes so the
    # output store is lane-dense.  Under jit with constant params this folds.
    w1b = w1.astype(jnp.bfloat16)
    w2b = w2.astype(jnp.bfloat16)
    w3b = jnp.zeros((HIDDEN, OUT_PADDED), jnp.bfloat16).at[:, :OUT_FEATURES].set(
        w3.astype(jnp.bfloat16))
    b3p = jnp.zeros((1, OUT_PADDED), jnp.float32).at[:, :OUT_FEATURES].set(b3)

    # Batch tile: multiple of 8, capped at 256; pad batch to a tile multiple.
    TB = min(256, _round_up(B, 8))
    Bp = _round_up(B, TB)
    xb = x_flat.astype(jnp.bfloat16)
    if Bp != B:
        xb = jnp.pad(xb, ((0, Bp - B), (0, 0)))

    grid = (Bp // TB,)
    out = pl.pallas_call(
        mlp_kernel,
        out_shape=jax.ShapeDtypeStruct((Bp, OUT_PADDED), jnp.float32),
        grid_spec=pltpu.PrefetchScalarGridSpec(
            num_scalar_prefetch=0,
            grid=grid,
            in_specs=[
                pl.BlockSpec((TB, IN_FEATURES), lambda i: (i, 0)),      # x streams
                pl.BlockSpec((IN_FEATURES, HIDDEN), lambda i: (0, 0)),  # weights resident
                pl.BlockSpec((1, HIDDEN), lambda i: (0, 0)),
                pl.BlockSpec((HIDDEN, HIDDEN), lambda i: (0, 0)),
                pl.BlockSpec((1, HIDDEN), lambda i: (0, 0)),
                pl.BlockSpec((HIDDEN, OUT_PADDED), lambda i: (0, 0)),
                pl.BlockSpec((1, OUT_PADDED), lambda i: (0, 0)),
            ],
            out_specs=pl.BlockSpec((TB, OUT_PADDED), lambda i: (i, 0)),
        ),
        compiler_params=pltpu.CompilerParams(
            dimension_semantics=("parallel",),   # batch tiles shard across TCs
            vmem_limit_bytes=64 << 20,
        ),
    )(xb, w1b, b1, w2b, b2, w3b, b3p)

    return out[:B, :OUT_FEATURES]


def init_params(key):
    """Deterministic init mimicking torch.nn.Linear default U(-1/sqrt(fan_in), +)."""
    ks = jax.random.split(key, 6)

    def linear(kw, kb, fan_in, fan_out):
        bound = 1.0 / jnp.sqrt(fan_in)
        w = jax.random.uniform(kw, (fan_in, fan_out), jnp.float32, -bound, bound)
        b = jax.random.uniform(kb, (1, fan_out), jnp.float32, -bound, bound)
        return w, b

    w1, b1 = linear(ks[0], ks[1], IN_FEATURES, HIDDEN)
    w2, b2 = linear(ks[2], ks[3], HIDDEN, HIDDEN)
    w3, b3 = linear(ks[4], ks[5], HIDDEN, OUT_FEATURES)
    return (w1, b1, w2, b2, w3, b3)


if __name__ == "__main__":
    key = jax.random.PRNGKey(0)
    k_param, k_x = jax.random.split(key)
    params = init_params(k_param)

    B = 8
    x = jax.random.normal(k_x, (B, 1, 28, 28), jnp.float32)

    logits = neural_network_forward(x, params)
    logits = jax.block_until_ready(logits)

    # Pure-JAX reference mirroring the kernel's bf16-input / f32-accumulate math.
    w1, b1, w2, b2, w3, b3 = params
    xf = x.reshape(B, -1).astype(jnp.bfloat16)
    h = jnp.dot(xf, w1.astype(jnp.bfloat16), preferred_element_type=jnp.float32) + b1
    h = jnp.maximum(h, 0.0).astype(jnp.bfloat16)
    h = jnp.dot(h, w2.astype(jnp.bfloat16), preferred_element_type=jnp.float32) + b2
    h = jnp.maximum(h, 0.0).astype(jnp.bfloat16)
    ref = jnp.dot(h, w3.astype(jnp.bfloat16), preferred_element_type=jnp.float32) + b3

    assert logits.shape == (B, OUT_FEATURES)
    assert jnp.allclose(logits, ref, atol=1e-2, rtol=1e-2)

    print("KERNEL_OK")
</pallas_src>

<mosaic_0001>
module attributes {stable_mosaic.version = 11 : i64} {
  func.func @mlp_kernel(%arg0: i32, %arg1: memref<8x784xbf16, #tpu.memory_space<vmem>>, %arg2: memref<784x512xbf16, #tpu.memory_space<vmem>>, %arg3: memref<1x512xf32, #tpu.memory_space<vmem>>, %arg4: memref<512x512xbf16, #tpu.memory_space<vmem>>, %arg5: memref<1x512xf32, #tpu.memory_space<vmem>>, %arg6: memref<512x128xbf16, #tpu.memory_space<vmem>>, %arg7: memref<1x128xf32, #tpu.memory_space<vmem>>, %arg8: memref<8x128xf32, #tpu.memory_space<vmem>>) attributes {dimension_semantics = [#tpu.dimension_semantics<parallel>], iteration_bounds = array<i64: 1>, scalar_prefetch = 0 : i64, scratch_operands = 0 : i64, tpu.core_type = #tpu.core_type<tc>, window_params = [{transform_indices = @transform_0, window_bounds = array<i64: 8, 784>}, {pipeline_mode = #tpu.pipeline_mode<synchronous>, transform_indices = @transform_1, window_bounds = array<i64: 784, 512>}, {pipeline_mode = #tpu.pipeline_mode<synchronous>, transform_indices = @transform_2, window_bounds = array<i64: 1, 512>}, {pipeline_mode = #tpu.pipeline_mode<synchronous>, transform_indices = @transform_3, window_bounds = array<i64: 512, 512>}, {pipeline_mode = #tpu.pipeline_mode<synchronous>, transform_indices = @transform_4, window_bounds = array<i64: 1, 512>}, {pipeline_mode = #tpu.pipeline_mode<synchronous>, transform_indices = @transform_5, window_bounds = array<i64: 512, 128>}, {pipeline_mode = #tpu.pipeline_mode<synchronous>, transform_indices = @transform_6, window_bounds = array<i64: 1, 128>}, {transform_indices = @transform_7, window_bounds = array<i64: 8, 128>}]} {
    %c0 = arith.constant 0 : index
    %c0_0 = arith.constant 0 : index
    %0 = vector.load %arg1[%c0, %c0_0] : memref<8x784xbf16, #tpu.memory_space<vmem>>, vector<8x784xbf16>
    %c0_1 = arith.constant 0 : index
    %c0_2 = arith.constant 0 : index
    %1 = vector.load %arg2[%c0_1, %c0_2] : memref<784x512xbf16, #tpu.memory_space<vmem>>, vector<784x512xbf16>
    %cst = arith.constant dense<0.000000e+00> : vector<8x512xf32>
    %2 = tpu.matmul %0, %1, %cst {dimension_numbers = #tpu.dot_dimension_numbers<[1], [0], [0], [1], [0, 0, 1, 1], [], []>} : vector<8x784xbf16>, vector<784x512xbf16>, vector<8x512xf32> -> vector<8x512xf32>
    %c0_3 = arith.constant 0 : index
    %c0_4 = arith.constant 0 : index
    %3 = vector.load %arg3[%c0_3, %c0_4] : memref<1x512xf32, #tpu.memory_space<vmem>>, vector<1x512xf32>
    %4 = vector.broadcast %3 : vector<1x512xf32> to vector<8x512xf32>
    %5 = arith.addf %2, %4 : vector<8x512xf32>
    %cst_5 = arith.constant 0.000000e+00 : f32
    %6 = vector.broadcast %cst_5 : f32 to vector<8x512xf32>
    %7 = arith.maximumf %5, %6 : vector<8x512xf32>
    %8 = arith.truncf %7 : vector<8x512xf32> to vector<8x512xbf16>
    %c0_6 = arith.constant 0 : index
    %c0_7 = arith.constant 0 : index
    %9 = vector.load %arg4[%c0_6, %c0_7] : memref<512x512xbf16, #tpu.memory_space<vmem>>, vector<512x512xbf16>
    %cst_8 = arith.constant dense<0.000000e+00> : vector<8x512xf32>
    %10 = tpu.matmul %8, %9, %cst_8 {dimension_numbers = #tpu.dot_dimension_numbers<[1], [0], [0], [1], [0, 0, 1, 1], [], []>} : vector<8x512xbf16>, vector<512x512xbf16>, vector<8x512xf32> -> vector<8x512xf32>
    %c0_9 = arith.constant 0 : index
    %c0_10 = arith.constant 0 : index
    %11 = vector.load %arg5[%c0_9, %c0_10] : memref<1x512xf32, #tpu.memory_space<vmem>>, vector<1x512xf32>
    %12 = vector.broadcast %11 : vector<1x512xf32> to vector<8x512xf32>
    %13 = arith.addf %10, %12 : vector<8x512xf32>
    %cst_11 = arith.constant 0.000000e+00 : f32
    %14 = vector.broadcast %cst_11 : f32 to vector<8x512xf32>
    %15 = arith.maximumf %13, %14 : vector<8x512xf32>
    %16 = arith.truncf %15 : vector<8x512xf32> to vector<8x512xbf16>
    %c0_12 = arith.constant 0 : index
    %c0_13 = arith.constant 0 : index
    %17 = vector.load %arg6[%c0_12, %c0_13] : memref<512x128xbf16, #tpu.memory_space<vmem>>, vector<512x128xbf16>
    %cst_14 = arith.constant dense<0.000000e+00> : vector<8x128xf32>
    %18 = tpu.matmul %16, %17, %cst_14 {dimension_numbers = #tpu.dot_dimension_numbers<[1], [0], [0], [1], [0, 0, 1, 1], [], []>} : vector<8x512xbf16>, vector<512x128xbf16>, vector<8x128xf32> -> vector<8x128xf32>
    %c0_15 = arith.constant 0 : index
    %c0_16 = arith.constant 0 : index
    %19 = vector.load %arg7[%c0_15, %c0_16] : memref<1x128xf32, #tpu.memory_space<vmem>>, vector<1x128xf32>
    %20 = vector.broadcast %19 : vector<1x128xf32> to vector<8x128xf32>
    %21 = arith.addf %18, %20 : vector<8x128xf32>
    %c0_17 = arith.constant 0 : index
    %c0_18 = arith.constant 0 : index
    %22 = vector.load %arg8[%c0_17, %c0_18] : memref<8x128xf32, #tpu.memory_space<vmem>>, vector<8x128xf32>
    tpu.vector_store %arg8[%c0_17, %c0_18], %21 {strides = array<i32>} : memref<8x128xf32, #tpu.memory_space<vmem>>, vector<8x128xf32>,
    return
  }
  func.func @transform_0(%arg0: i32) -> (i32, i32) {
    %c0_i32 = arith.constant 0 : i32
    %c0_i32_0 = arith.constant 0 : i32
    return %arg0, %c0_i32 : i32, i32
  }
  func.func @transform_1(%arg0: i32) -> (i32, i32) {
    %c0_i32 = arith.constant 0 : i32
    %c0_i32_0 = arith.constant 0 : i32
    %c0_i32_1 = arith.constant 0 : i32
    return %c0_i32, %c0_i32_0 : i32, i32
  }
  func.func @transform_2(%arg0: i32) -> (i32, i32) {
    %c0_i32 = arith.constant 0 : i32
    %c0_i32_0 = arith.constant 0 : i32
    %c0_i32_1 = arith.constant 0 : i32
    return %c0_i32, %c0_i32_0 : i32, i32
  }
  func.func @transform_3(%arg0: i32) -> (i32, i32) {
    %c0_i32 = arith.constant 0 : i32
    %c0_i32_0 = arith.constant 0 : i32
    %c0_i32_1 = arith.constant 0 : i32
    return %c0_i32, %c0_i32_0 : i32, i32
  }
  func.func @transform_4(%arg0: i32) -> (i32, i32) {
    %c0_i32 = arith.constant 0 : i32
    %c0_i32_0 = arith.constant 0 : i32
    %c0_i32_1 = arith.constant 0 : i32
    return %c0_i32, %c0_i32_0 : i32, i32
  }
  func.func @transform_5(%arg0: i32) -> (i32, i32) {
    %c0_i32 = arith.constant 0 : i32
    %c0_i32_0 = arith.constant 0 : i32
    %c0_i32_1 = arith.constant 0 : i32
    return %c0_i32, %c0_i32_0 : i32, i32
  }
  func.func @transform_6(%arg0: i32) -> (i32, i32) {
    %c0_i32 = arith.constant 0 : i32
    %c0_i32_0 = arith.constant 0 : i32
    %c0_i32_1 = arith.constant 0 : i32
    return %c0_i32, %c0_i32_0 : i32, i32
  }
  func.func @transform_7(%arg0: i32) -> (i32, i32) {
    %c0_i32 = arith.constant 0 : i32
    %c0_i32_0 = arith.constant 0 : i32
    return %arg0, %c0_i32 : i32, i32
  }
}

</mosaic_0001>

<llo_original>
// kernel: neural_network_forward.1
$region0: #{neural_network_forward.1}
  #allocation0 [shape = 'u32[]', space=smem, size = 0x4, offset = 0x4, fixed_abs, tag = 'smem constant byte address 0x4 - core index']
  #allocation1 [shape = 'u32[144,128]{1,0:T(1,128)}', space=vmem, size = 0x12000, scoped, tag = 'internal scratch']
  %s0 = inlined_call_operand.hbm [shape: bf16[8,784], index: 0, kind: input, shape index: {}]
  %s1 = inlined_call_operand.hbm [shape: bf16[784,512], index: 1, kind: input, shape index: {}]
  %s2 = inlined_call_operand.hbm [shape: f32[1,512], index: 2, kind: input, shape index: {}]
  %s3 = inlined_call_operand.hbm [shape: bf16[512,512], index: 3, kind: input, shape index: {}]
  %s4 = inlined_call_operand.hbm [shape: f32[1,512], index: 4, kind: input, shape index: {}]
  %s5 = inlined_call_operand.hbm [shape: bf16[512,128], index: 5, kind: input, shape index: {}]
  %s6 = inlined_call_operand.hbm [shape: f32[1,128], index: 6, kind: input, shape index: {}]
  %s7 = inlined_call_operand.hbm [shape: f32[8,128], index: 7, kind: output, shape index: {}]
  %s8 = sld [smem:[#allocation0]]
  $region66: #{neural_network_forward.1} parent=0
    _
  %s10 = ssub.s32 1, %s8
  %s11 = scalar_select 0, %s10, %s8
  $region1: #{neural_network_forward.1} parent=0
    #allocation2 [shape = 'u8[14336]{0}', space=vmem, size = 0x3800, scoped, tag = 'input window, operand 0, single buffered']
    #allocation3 [shape = 's32[1]{0}', space=sflag, size = 0x4, scoped, tag = 'scoped memory for neural_network_forward.1']
    #allocation4 [shape = 's32[1]{0}', space=sflag, size = 0x4, scoped, tag = 'scoped memory for neural_network_forward.1']
    #allocation5 [shape = 'u8[802816]{0}', space=vmem, size = 0xc4000, scoped, tag = 'input window, operand 1, single buffered']
    #allocation6 [shape = 's32[1]{0}', space=sflag, size = 0x4, scoped, tag = 'scoped memory for neural_network_forward.1']
    #allocation7 [shape = 'u8[2048]{0}', space=vmem, size = 0x800, scoped, tag = 'input window, operand 2, single buffered']
    #allocation8 [shape = 'u8[524288]{0}', space=vmem, size = 0x80000, scoped, tag = 'input window, operand 3, single buffered']
    #allocation9 [shape = 's32[1]{0}', space=sflag, size = 0x4, scoped, tag = 'scoped memory for neural_network_forward.1']
    #allocation10 [shape = 'u8[2048]{0}', space=vmem, size = 0x800, scoped, tag = 'input window, operand 4, single buffered']
    #allocation11 [shape = 'u8[131072]{0}', space=vmem, size = 0x20000, scoped, tag = 'input window, operand 5, single buffered']
    #allocation12 [shape = 's32[1]{0}', space=sflag, size = 0x4, scoped, tag = 'scoped memory for neural_network_forward.1']
    #allocation13 [shape = 'u8[512]{0}', space=vmem, size = 0x400, scoped, tag = 'input window, operand 6, single buffered']
    #allocation14 [shape = 'u8[4096]{0}', space=vmem, size = 0x1000, scoped, tag = 'output window, operand 0, single buffered']
    %12 = vsyncpa [#allocation3], 0
    %13 = vsyncpa [#allocation6], 0
    %14 = vsyncpa [#allocation9], 0
    %15 = vsyncpa [#allocation12], 0
    %16 = vsyncpa [#allocation4], 0
    // Predicated region
    $region2: #{neural_network_forward.1} parent=1 // pred_check
      _
    $region3: #{neural_network_forward.1} parent=1 // pred_check_branch
      %18 = sbr.rel (0) target = $region5
    $region4: #{neural_network_forward.1} parent=1 // pred_region
      %s20 = ssub.s32 448, 448
      %21 = vsyncadd [#allocation3], %s20
      %s23 = sshll.u32 [#allocation2], 4
      %s24 = int_to_ptr.vmem [resolvable:$true] %s23
      %26 = dma.hbm_to_vmem [thread:$0]  %s0, 448, %s24, [#allocation3]
    $region5: #{neural_network_forward.1} parent=1 // pred_fallthru
      _
    // Predicated region
    $region6: #{neural_network_forward.1} parent=1 // pred_check
      _
    $region7: #{neural_network_forward.1} parent=1 // pred_check_branch
      %28 = sbr.rel (0) target = $region9
    $region8: #{neural_network_forward.1} parent=1 // pred_region
      %s30 = ssub.s32 25088, 25088
      %31 = vsyncadd [#allocation6], %s30
      %s32 = sshll.u32 [#allocation5], 4
      %s33 = int_to_ptr.vmem [resolvable:$true] %s32
      %38 = dma.hbm_to_vmem [thread:$0]  %s1, 25088, %s33, [#allocation6], 256, 256, 16
    $region9: #{neural_network_forward.1} parent=1 // pred_fallthru
      _
    // Predicated region
    $region10: #{neural_network_forward.1} parent=1 // pred_check
      _
    $region11: #{neural_network_forward.1} parent=1 // pred_check_branch
      %40 = sbr.rel (0) target = $region13
    $region12: #{neural_network_forward.1} parent=1 // pred_region
      %s42 = ssub.s32 64, 64
      %43 = vsyncadd [#allocation6], %s42
      %s45 = sshll.u32 [#allocation7], 4
      %s46 = int_to_ptr.vmem [resolvable:$true] %s45
      %48 = dma.hbm_to_vmem [thread:$0]  %s2, 64, %s46, [#allocation6]
    $region13: #{neural_network_forward.1} parent=1 // pred_fallthru
      _
    // Predicated region
    $region14: #{neural_network_forward.1} parent=1 // pred_check
      _
    $region15: #{neural_network_forward.1} parent=1 // pred_check_branch
      %50 = sbr.rel (0) target = $region17
    $region16: #{neural_network_forward.1} parent=1 // pred_region
      %s52 = ssub.s32 16384, 16384
      %53 = vsyncadd [#allocation9], %s52
      %s54 = sshll.u32 [#allocation8], 4
      %s55 = int_to_ptr.vmem [resolvable:$true] %s54
      %60 = dma.hbm_to_vmem [thread:$0]  %s3, 16384, %s55, [#allocation9], 256, 256, 16
    $region17: #{neural_network_forward.1} parent=1 // pred_fallthru
      _
    // Predicated region
    $region18: #{neural_network_forward.1} parent=1 // pred_check
      _
    $region19: #{neural_network_forward.1} parent=1 // pred_check_branch
      %62 = sbr.rel (0) target = $region21
    $region20: #{neural_network_forward.1} parent=1 // pred_region
      %s64 = ssub.s32 64, 64
      %65 = vsyncadd [#allocation9], %s64
      %s67 = sshll.u32 [#allocation10], 4
      %s68 = int_to_ptr.vmem [resolvable:$true] %s67
      %70 = dma.hbm_to_vmem [thread:$0]  %s4, 64, %s68, [#allocation9]
    $region21: #{neural_network_forward.1} parent=1 // pred_fallthru
      _
    // Predicated region
    $region22: #{neural_network_forward.1} parent=1 // pred_check
      _
    $region23: #{neural_network_forward.1} parent=1 // pred_check_branch
      %72 = sbr.rel (0) target = $region25
    $region24: #{neural_network_forward.1} parent=1 // pred_region
      %s74 = ssub.s32 4096, 4096
      %75 = vsyncadd [#allocation12], %s74
      %s76 = sshll.u32 [#allocation11], 4
      %s77 = int_to_ptr.vmem [resolvable:$true] %s76
      %82 = dma.hbm_to_vmem [thread:$0]  %s5, 4096, %s77, [#allocation12], 64, 64, 4
    $region25: #{neural_network_forward.1} parent=1 // pred_fallthru
      _
    // Predicated region
    $region26: #{neural_network_forward.1} parent=1 // pred_check
      _
    $region27: #{neural_network_forward.1} parent=1 // pred_check_branch
      %84 = sbr.rel (0) target = $region29
    $region28: #{neural_network_forward.1} parent=1 // pred_region
      %s86 = ssub.s32 16, 16
      %87 = vsyncadd [#allocation12], %s86
      %s89 = sshll.u32 [#allocation13], 4
      %s90 = int_to_ptr.vmem [resolvable:$true] %s89
      %92 = dma.hbm_to_vmem [thread:$0]  %s6, 16, %s90, [#allocation12]
    $region29: #{neural_network_forward.1} parent=1 // pred_fallthru
      _
    // Predicated region
    $region30: #{neural_network_forward.1} parent=1 // pred_check
      _
    $region31: #{neural_network_forward.1} parent=1 // pred_check_branch
      %94 = sbr.rel (0) target = $region33
    $region32: #{neural_network_forward.1} parent=1 // pred_region
      %95 = dma.done [#allocation3], 448
    $region33: #{neural_network_forward.1} parent=1 // pred_fallthru
      _
    // Predicated region
    $region34: #{neural_network_forward.1} parent=1 // pred_check
      _
    $region35: #{neural_network_forward.1} parent=1 // pred_check_branch
      %97 = sbr.rel (0) target = $region37
    $region36: #{neural_network_forward.1} parent=1 // pred_region
      %98 = dma.done [#allocation6], 25088
    $region37: #{neural_network_forward.1} parent=1 // pred_fallthru
      _
    // Predicated region
    $region38: #{neural_network_forward.1} parent=1 // pred_check
      _
    $region39: #{neural_network_forward.1} parent=1 // pred_check_branch
      %100 = sbr.rel (0) target = $region41
    $region40: #{neural_network_forward.1} parent=1 // pred_region
      %101 = dma.done [#allocation6], 64
    $region41: #{neural_network_forward.1} parent=1 // pred_fallthru
      _
    // Predicated region
    $region42: #{neural_network_forward.1} parent=1 // pred_check
      _
    $region43: #{neural_network_forward.1} parent=1 // pred_check_branch
      %103 = sbr.rel (0) target = $region45
    $region44: #{neural_network_forward.1} parent=1 // pred_region
      %104 = dma.done [#allocation9], 16384
    $region45: #{neural_network_forward.1} parent=1 // pred_fallthru
      _
    // Predicated region
    $region46: #{neural_network_forward.1} parent=1 // pred_check
      _
    $region47: #{neural_network_forward.1} parent=1 // pred_check_branch
      %106 = sbr.rel (0) target = $region49
    $region48: #{neural_network_forward.1} parent=1 // pred_region
      %107 = dma.done [#allocation9], 64
    $region49: #{neural_network_forward.1} parent=1 // pred_fallthru
      _
    // Predicated region
    $region50: #{neural_network_forward.1} parent=1 // pred_check
      _
    $region51: #{neural_network_forward.1} parent=1 // pred_check_branch
      %109 = sbr.rel (0) target = $region53
    $region52: #{neural_network_forward.1} parent=1 // pred_region
      %110 = dma.done [#allocation12], 4096
    $region53: #{neural_network_forward.1} parent=1 // pred_fallthru
      _
    // Predicated region
    $region54: #{neural_network_forward.1} parent=1 // pred_check
      _
    $region55: #{neural_network_forward.1} parent=1 // pred_check_branch
      %112 = sbr.rel (0) target = $region57
    $region56: #{neural_network_forward.1} parent=1 // pred_region
      %113 = dma.done [#allocation12], 16
    $region57: #{neural_network_forward.1} parent=1 // pred_fallthru
      _
    %v115 = vld [vmem:[#allocation2] sm:$0xff]
    %v116 = vld [vmem:[#allocation2 + $0x8] sm:$0xff]
    %v117 = vld [vmem:[#allocation2 + $0x10] sm:$0xff]
    %v118 = vld [vmem:[#allocation2 + $0x18] sm:$0xf]
    %v119 = vld [vmem:[#allocation5] sm:$0xff]
    %v120 = vld [vmem:[#allocation5 + $0x8] sm:$0xff]
    %v121 = vld [vmem:[#allocation5 + $0x10] sm:$0xff]
    %v122 = vld [vmem:[#allocation5 + $0x18] sm:$0xff]
    %v123 = vld [vmem:[#allocation5 + $0x20] sm:$0xff]
    %v124 = vld [vmem:[#allocation5 + $0x28] sm:$0xff]
    %v125 = vld [vmem:[#allocation5 + $0x30] sm:$0xff]
    %v126 = vld [vmem:[#allocation5 + $0x38] sm:$0xff]
    %v127 = vld [vmem:[#allocation5 + $0x40] sm:$0xff]
    %v128 = vld [vmem:[#allocation5 + $0x48] sm:$0xff]
    %v129 = vld [vmem:[#allocation5 + $0x50] sm:$0xff]
    %v130 = vld [vmem:[#allocation5 + $0x58] sm:$0xff]
    %v131 = vld [vmem:[#allocation5 + $0x60] sm:$0xff]
    %v132 = vld [vmem:[#allocation5 + $0x68] sm:$0xff]
    %v133 = vld [vmem:[#allocation5 + $0x70] sm:$0xff]
    %v134 = vld [vmem:[#allocation5 + $0x78] sm:$0xff]
    %v135 = vld [vmem:[#allocation5 + $0x80] sm:$0xff]
    %v136 = vld [vmem:[#allocation5 + $0x88] sm:$0xff]
    %v137 = vld [vmem:[#allocation5 + $0x90] sm:$0xff]
    %v138 = vld [vmem:[#allocation5 + $0x98] sm:$0xff]
    %v139 = vld [vmem:[#allocation5 + $0xa0] sm:$0xff]
    %v140 = vld [vmem:[#allocation5 + $0xa8] sm:$0xff]
    %v141 = vld [vmem:[#allocation5 + $0xb0] sm:$0xff]
    %v142 = vld [vmem:[#allocation5 + $0xb8] sm:$0xff]
    %v143 = vld [vmem:[#allocation5 + $0xc0] sm:$0xff]
    %v144 = vld [vmem:[#allocation5 + $0xc8] sm:$0xff]
    %v145 = vld [vmem:[#allocation5 + $0xd0] sm:$0xff]
    %v146 = vld [vmem:[#allocation5 + $0xd8] sm:$0xff]
    %v147 = vld [vmem:[#allocation5 + $0xe0] sm:$0xff]
    %v148 = vld [vmem:[#allocation5 + $0xe8] sm:$0xff]
    %v149 = vld [vmem:[#allocation5 + $0xf0] sm:$0xff]
    %v150 = vld [vmem:[#allocation5 + $0xf8] sm:$0xff]
    %v151 = vld [vmem:[#allocation5 + $0x100] sm:$0xff]
    %v152 = vld [vmem:[#allocation5 + $0x108] sm:$0xff]
    %v153 = vld [vmem:[#allocation5 + $0x110] sm:$0xff]
    %v154 = vld [vmem:[#allocation5 + $0x118] sm:$0xff]
    %v155 = vld [vmem:[#allocation5 + $0x120] sm:$0xff]
    %v156 = vld [vmem:[#allocation5 + $0x128] sm:$0xff]
    %v157 = vld [vmem:[#allocation5 + $0x130] sm:$0xff]
    %v158 = vld [vmem:[#allocation5 + $0x138] sm:$0xff]
    %v159 = vld [vmem:[#allocation5 + $0x140] sm:$0xff]
    %v160 = vld [vmem:[#allocation5 + $0x148] sm:$0xff]
    %v161 = vld [vmem:[#allocation5 + $0x150] sm:$0xff]
    %v162 = vld [vmem:[#allocation5 + $0x158] sm:$0xff]
    %v163 = vld [vmem:[#allocation5 + $0x160] sm:$0xff]
    %v164 = vld [vmem:[#allocation5 + $0x168] sm:$0xff]
    %v165 = vld [vmem:[#allocation5 + $0x170] sm:$0xff]
    %v166 = vld [vmem:[#allocation5 + $0x178] sm:$0xff]
    %v167 = vld [vmem:[#allocation5 + $0x180] sm:$0xff]
    %v168 = vld [vmem:[#allocation5 + $0x188] sm:$0xff]
    %v169 = vld [vmem:[#allocation5 + $0x190] sm:$0xff]
    %v170 = vld [vmem:[#allocation5 + $0x198] sm:$0xff]
    %v171 = vld [vmem:[#allocation5 + $0x1a0] sm:$0xff]
    %v172 = vld [vmem:[#allocation5 + $0x1a8] sm:$0xff]
    %v173 = vld [vmem:[#allocation5 + $0x1b0] sm:$0xff]
    %v174 = vld [vmem:[#allocation5 + $0x1b8] sm:$0xff]
    %v175 = vld [vmem:[#allocation5 + $0x1c0] sm:$0xff]
    %v176 = vld [vmem:[#allocation5 + $0x1c8] sm:$0xff]
    %v177 = vld [vmem:[#allocation5 + $0x1d0] sm:$0xff]
    %v178 = vld [vmem:[#allocation5 + $0x1d8] sm:$0xff]
    %v179 = vld [vmem:[#allocation5 + $0x1e0] sm:$0xff]
    %v180 = vld [vmem:[#allocation5 + $0x1e8] sm:$0xff]
    %v181 = vld [vmem:[#allocation5 + $0x1f0] sm:$0xff]
    %v182 = vld [vmem:[#allocation5 + $0x1f8] sm:$0xff]
    %v183 = vld [vmem:[#allocation5 + $0x200] sm:$0xff]
    %v184 = vld [vmem:[#allocation5 + $0x208] sm:$0xff]
    %v185 = vld [vmem:[#allocation5 + $0x210] sm:$0xff]
    %v186 = vld [vmem:[#allocation5 + $0x218] sm:$0xff]
    %v187 = vld [vmem:[#allocation5 + $0x220] sm:$0xff]
    %v188 = vld [vmem:[#allocation5 + $0x228] sm:$0xff]
    %v189 = vld [vmem:[#allocation5 + $0x230] sm:$0xff]
    %v190 = vld [vmem:[#allocation5 + $0x238] sm:$0xff]
    %v191 = vld [vmem:[#allocation5 + $0x240] sm:$0xff]
    %v192 = vld [vmem:[#allocation5 + $0x248] sm:$0xff]
    %v193 = vld [vmem:[#allocation5 + $0x250] sm:$0xff]
    %v194 = vld [vmem:[#allocation5 + $0x258] sm:$0xff]
    %v195 = vld [vmem:[#allocation5 + $0x260] sm:$0xff]
    %v196 = vld [vmem:[#allocation5 + $0x268] sm:$0xff]
    %v197 = vld [vmem:[#allocation5 + $0x270] sm:$0xff]
    %v198 = vld [vmem:[#allocation5 + $0x278] sm:$0xff]
    %v199 = vld [vmem:[#allocation5 + $0x280] sm:$0xff]
    %v200 = vld [vmem:[#allocation5 + $0x288] sm:$0xff]
    %v201 = vld [vmem:[#allocation5 + $0x290] sm:$0xff]
    %v202 = vld [vmem:[#allocation5 + $0x298] sm:$0xff]
    %v203 = vld [vmem:[#allocation5 + $0x2a0] sm:$0xff]
    %v204 = vld [vmem:[#allocation5 + $0x2a8] sm:$0xff]
    %v205 = vld [vmem:[#allocation5 + $0x2b0] sm:$0xff]
    %v206 = vld [vmem:[#allocation5 + $0x2b8] sm:$0xff]
    %v207 = vld [vmem:[#allocation5 + $0x2c0] sm:$0xff]
    %v208 = vld [vmem:[#allocation5 + $0x2c8] sm:$0xff]
    %v209 = vld [vmem:[#allocation5 + $0x2d0] sm:$0xff]
    %v210 = vld [vmem:[#allocation5 + $0x2d8] sm:$0xff]
    %v211 = vld [vmem:[#allocation5 + $0x2e0] sm:$0xff]
    %v212 = vld [vmem:[#allocation5 + $0x2e8] sm:$0xff]
    %v213 = vld [vmem:[#allocation5 + $0x2f0] sm:$0xff]
    %v214 = vld [vmem:[#allocation5 + $0x2f8] sm:$0xff]
    %v215 = vld [vmem:[#allocation5 + $0x300] sm:$0xff]
    %v216 = vld [vmem:[#allocation5 + $0x308] sm:$0xff]
    %v217 = vld [vmem:[#allocation5 + $0x310] sm:$0xff]
    %v218 = vld [vmem:[#allocation5 + $0x318] sm:$0xff]
    %v219 = vld [vmem:[#allocation5 + $0x320] sm:$0xff]
    %v220 = vld [vmem:[#allocation5 + $0x328] sm:$0xff]
    %v221 = vld [vmem:[#allocation5 + $0x330] sm:$0xff]
    %v222 = vld [vmem:[#allocation5 + $0x338] sm:$0xff]
    %v223 = vld [vmem:[#allocation5 + $0x340] sm:$0xff]
    %v224 = vld [vmem:[#allocation5 + $0x348] sm:$0xff]
    %v225 = vld [vmem:[#allocation5 + $0x350] sm:$0xff]
    %v226 = vld [vmem:[#allocation5 + $0x358] sm:$0xff]
    %v227 = vld [vmem:[#allocation5 + $0x360] sm:$0xff]
    %v228 = vld [vmem:[#allocation5 + $0x368] sm:$0xff]
    %v229 = vld [vmem:[#allocation5 + $0x370] sm:$0xff]
    %v230 = vld [vmem:[#allocation5 + $0x378] sm:$0xff]
    %v231 = vld [vmem:[#allocation5 + $0x380] sm:$0xff]
    %v232 = vld [vmem:[#allocation5 + $0x388] sm:$0xff]
    %v233 = vld [vmem:[#allocation5 + $0x390] sm:$0xff]
    %v234 = vld [vmem:[#allocation5 + $0x398] sm:$0xff]
    %v235 = vld [vmem:[#allocation5 + $0x3a0] sm:$0xff]
    %v236 = vld [vmem:[#allocation5 + $0x3a8] sm:$0xff]
    %v237 = vld [vmem:[#allocation5 + $0x3b0] sm:$0xff]
    %v238 = vld [vmem:[#allocation5 + $0x3b8] sm:$0xff]
    %v239 = vld [vmem:[#allocation5 + $0x3c0] sm:$0xff]
    %v240 = vld [vmem:[#allocation5 + $0x3c8] sm:$0xff]
    %v241 = vld [vmem:[#allocation5 + $0x3d0] sm:$0xff]
    %v242 = vld [vmem:[#allocation5 + $0x3d8] sm:$0xff]
    %v243 = vld [vmem:[#allocation5 + $0x3e0] sm:$0xff]
    %v244 = vld [vmem:[#allocation5 + $0x3e8] sm:$0xff]
    %v245 = vld [vmem:[#allocation5 + $0x3f0] sm:$0xff]
    %v246 = vld [vmem:[#allocation5 + $0x3f8] sm:$0xff]
    %v247 = vld [vmem:[#allocation5 + $0x400] sm:$0xff]
    %v248 = vld [vmem:[#allocation5 + $0x408] sm:$0xff]
    %v249 = vld [vmem:[#allocation5 + $0x410] sm:$0xff]
    %v250 = vld [vmem:[#allocation5 + $0x418] sm:$0xff]
    %v251 = vld [vmem:[#allocation5 + $0x420] sm:$0xff]
    %v252 = vld [vmem:[#allocation5 + $0x428] sm:$0xff]
    %v253 = vld [vmem:[#allocation5 + $0x430] sm:$0xff]
    %v254 = vld [vmem:[#allocation5 + $0x438] sm:$0xff]
    %v255 = vld [vmem:[#allocation5 + $0x440] sm:$0xff]
    %v256 = vld [vmem:[#allocation5 + $0x448] sm:$0xff]
    %v257 = vld [vmem:[#allocation5 + $0x450] sm:$0xff]
    %v258 = vld [vmem:[#allocation5 + $0x458] sm:$0xff]
    %v259 = vld [vmem:[#allocation5 + $0x460] sm:$0xff]
    %v260 = vld [vmem:[#allocation5 + $0x468] sm:$0xff]
    %v261 = vld [vmem:[#allocation5 + $0x470] sm:$0xff]
    %v262 = vld [vmem:[#allocation5 + $0x478] sm:$0xff]
    %v263 = vld [vmem:[#allocation5 + $0x480] sm:$0xff]
    %v264 = vld [vmem:[#allocation5 + $0x488] sm:$0xff]
    %v265 = vld [vmem:[#allocation5 + $0x490] sm:$0xff]
    %v266 = vld [vmem:[#allocation5 + $0x498] sm:$0xff]
    %v267 = vld [vmem:[#allocation5 + $0x4a0] sm:$0xff]
    %v268 = vld [vmem:[#allocation5 + $0x4a8] sm:$0xff]
    %v269 = vld [vmem:[#allocation5 + $0x4b0] sm:$0xff]
    %v270 = vld [vmem:[#allocation5 + $0x4b8] sm:$0xff]
    %v271 = vld [vmem:[#allocation5 + $0x4c0] sm:$0xff]
    %v272 = vld [vmem:[#allocation5 + $0x4c8] sm:$0xff]
    %v273 = vld [vmem:[#allocation5 + $0x4d0] sm:$0xff]
    %v274 = vld [vmem:[#allocation5 + $0x4d8] sm:$0xff]
    %v275 = vld [vmem:[#allocation5 + $0x4e0] sm:$0xff]
    %v276 = vld [vmem:[#allocation5 + $0x4e8] sm:$0xff]
    %v277 = vld [vmem:[#allocation5 + $0x4f0] sm:$0xff]
    %v278 = vld [vmem:[#allocation5 + $0x4f8] sm:$0xff]
    %v279 = vld [vmem:[#allocation5 + $0x500] sm:$0xff]
    %v280 = vld [vmem:[#allocation5 + $0x508] sm:$0xff]
    %v281 = vld [vmem:[#allocation5 + $0x510] sm:$0xff]
    %v282 = vld [vmem:[#allocation5 + $0x518] sm:$0xff]
    %v283 = vld [vmem:[#allocation5 + $0x520] sm:$0xff]
    %v284 = vld [vmem:[#allocation5 + $0x528] sm:$0xff]
    %v285 = vld [vmem:[#allocation5 + $0x530] sm:$0xff]
    %v286 = vld [vmem:[#allocation5 + $0x538] sm:$0xff]
    %v287 = vld [vmem:[#allocation5 + $0x540] sm:$0xff]
    %v288 = vld [vmem:[#allocation5 + $0x548] sm:$0xff]
    %v289 = vld [vmem:[#allocation5 + $0x550] sm:$0xff]
    %v290 = vld [vmem:[#allocation5 + $0x558] sm:$0xff]
    %v291 = vld [vmem:[#allocation5 + $0x560] sm:$0xff]
    %v292 = vld [vmem:[#allocation5 + $0x568] sm:$0xff]
    %v293 = vld [vmem:[#allocation5 + $0x570] sm:$0xff]
    %v294 = vld [vmem:[#allocation5 + $0x578] sm:$0xff]
    %v295 = vld [vmem:[#allocation5 + $0x580] sm:$0xff]
    %v296 = vld [vmem:[#allocation5 + $0x588] sm:$0xff]
    %v297 = vld [vmem:[#allocation5 + $0x590] sm:$0xff]
    %v298 = vld [vmem:[#allocation5 + $0x598] sm:$0xff]
    %v299 = vld [vmem:[#allocation5 + $0x5a0] sm:$0xff]
    %v300 = vld [vmem:[#allocation5 + $0x5a8] sm:$0xff]
    %v301 = vld [vmem:[#allocation5 + $0x5b0] sm:$0xff]
    %v302 = vld [vmem:[#allocation5 + $0x5b8] sm:$0xff]
    %v303 = vld [vmem:[#allocation5 + $0x5c0] sm:$0xff]
    %v304 = vld [vmem:[#allocation5 + $0x5c8] sm:$0xff]
    %v305 = vld [vmem:[#allocation5 + $0x5d0] sm:$0xff]
    %v306 = vld [vmem:[#allocation5 + $0x5d8] sm:$0xff]
    %v307 = vld [vmem:[#allocation5 + $0x5e0] sm:$0xff]
    %v308 = vld [vmem:[#allocation5 + $0x5e8] sm:$0xff]
    %v309 = vld [vmem:[#allocation5 + $0x5f0] sm:$0xff]
    %v310 = vld [vmem:[#allocation5 + $0x5f8] sm:$0xff]
    %v311 = vld [vmem:[#allocation5 + $0x600] sm:$0xff]
    %v312 = vld [vmem:[#allocation5 + $0x608] sm:$0xff]
    %v313 = vld [vmem:[#allocation5 + $0x610] sm:$0xff]
    %v314 = vld [vmem:[#allocation5 + $0x618] sm:$0xff]
    %v315 = vld [vmem:[#allocation7] sm:$0xf]
    %v317 = vlaneseq
    %v318 = vshrl.u32 %v317, 7
    %v319 = vsub.s32 0, %v318
    %v320 = vrot.slane %v315, %v319
    %v321 = vlaneseq
    %v322 = vshrl.u32 %v321, 7
    %v323 = vsub.s32 1, %v322
    %v324 = vrot.slane %v315, %v323
    %v325 = vlaneseq
    %v326 = vshrl.u32 %v325, 7
    %v327 = vsub.s32 2, %v326
    %v328 = vrot.slane %v315, %v327
    %v329 = vlaneseq
    %v330 = vshrl.u32 %v329, 7
    %v331 = vsub.s32 3, %v330
    %v332 = vrot.slane %v315, %v331
    %v341 = vunpack.c.l.b16 %v115
    %v342 = vunpack.c.h.b16 %v115
    %v343 = vunpack.c.l.b16 %v116
    %v344 = vunpack.c.h.b16 %v116
    %v345 = vunpack.c.l.b16 %v117
    %v346 = vunpack.c.h.b16 %v117
    %v347 = vunpack.c.l.b16 %v118
    %v348 = vpack.c.b16 %v341, %v341
    %v349 = vpack.c.b16 %v342, %v342
    %v350 = vpack.c.b16 %v343, %v343
    %v351 = vpack.c.b16 %v344, %v344
    %v352 = vpack.c.b16 %v345, %v345
    %v353 = vpack.c.b16 %v346, %v346
    %v354 = vpack.c.b16 %v347, %v347
    %v557 = vunpack.c.l.b16 %v119
    %v558 = vunpack.c.h.b16 %v119
    %v559 = vunpack.c.l.b16 %v120
    %v560 = vunpack.c.h.b16 %v120
    %v561 = vunpack.c.l.b16 %v121
    %v562 = vunpack.c.h.b16 %v121
    %v563 = vunpack.c.l.b16 %v122
    %v564 = vunpack.c.h.b16 %v122
    %v565 = vunpack.c.l.b16 %v123
    %v566 = vunpack.c.h.b16 %v123
    %v567 = vunpack.c.l.b16 %v124
    %v568 = vunpack.c.h.b16 %v124
    %v569 = vunpack.c.l.b16 %v125
    %v570 = vunpack.c.h.b16 %v125
    %v571 = vunpack.c.l.b16 %v126
    %v572 = vunpack.c.h.b16 %v126
    %v573 = vunpack.c.l.b16 %v127
    %v574 = vunpack.c.h.b16 %v127
    %v575 = vunpack.c.l.b16 %v128
    %v576 = vunpack.c.h.b16 %v128
    %v577 = vunpack.c.l.b16 %v129
    %v578 = vunpack.c.h.b16 %v129
    %v579 = vunpack.c.l.b16 %v130
    %v580 = vunpack.c.h.b16 %v130
    %v581 = vunpack.c.l.b16 %v131
    %v582 = vunpack.c.h.b16 %v131
    %v583 = vunpack.c.l.b16 %v132
    %v584 = vunpack.c.h.b16 %v132
    %v585 = vunpack.c.l.b16 %v133
    %v586 = vunpack.c.h.b16 %v133
    %v587 = vunpack.c.l.b16 %v134
    %v588 = vunpack.c.h.b16 %v134
    %v589 = vunpack.c.l.b16 %v135
    %v590 = vunpack.c.h.b16 %v135
    %v591 = vunpack.c.l.b16 %v136
    %v592 = vunpack.c.h.b16 %v136
    %v593 = vunpack.c.l.b16 %v137
    %v594 = vunpack.c.h.b16 %v137
    %v595 = vunpack.c.l.b16 %v138
    %v596 = vunpack.c.h.b16 %v138
    %v597 = vunpack.c.l.b16 %v139
    %v598 = vunpack.c.h.b16 %v139
    %v599 = vunpack.c.l.b16 %v140
    %v600 = vunpack.c.h.b16 %v140
    %v601 = vunpack.c.l.b16 %v141
    %v602 = vunpack.c.h.b16 %v141
    %v603 = vunpack.c.l.b16 %v142
    %v604 = vunpack.c.h.b16 %v142
    %v605 = vunpack.c.l.b16 %v143
    %v606 = vunpack.c.h.b16 %v143
    %v607 = vunpack.c.l.b16 %v144
    %v608 = vunpack.c.h.b16 %v144
    %v609 = vunpack.c.l.b16 %v145
    %v610 = vunpack.c.h.b16 %v145
    %v611 = vunpack.c.l.b16 %v146
    %v612 = vunpack.c.h.b16 %v146
    %v613 = vunpack.c.l.b16 %v147
    %v614 = vunpack.c.h.b16 %v147
    %v615 = vunpack.c.l.b16 %v148
    %v616 = vunpack.c.h.b16 %v148
    %v617 = vunpack.c.l.b16 %v149
    %v618 = vunpack.c.h.b16 %v149
    %v619 = vunpack.c.l.b16 %v150
    %v620 = vunpack.c.h.b16 %v150
    %v621 = vunpack.c.l.b16 %v151
    %v622 = vunpack.c.h.b16 %v151
    %v623 = vunpack.c.l.b16 %v152
    %v624 = vunpack.c.h.b16 %v152
    %v625 = vunpack.c.l.b16 %v153
    %v626 = vunpack.c.h.b16 %v153
    %v627 = vunpack.c.l.b16 %v154
    %v628 = vunpack.c.h.b16 %v154
    %v629 = vunpack.c.l.b16 %v155
    %v630 = vunpack.c.h.b16 %v155
    %v631 = vunpack.c.l.b16 %v156
    %v632 = vunpack.c.h.b16 %v156
    %v633 = vunpack.c.l.b16 %v157
    %v634 = vunpack.c.h.b16 %v157
    %v635 = vunpack.c.l.b16 %v158
    %v636 = vunpack.c.h.b16 %v158
    %v637 = vunpack.c.l.b16 %v159
    %v638 = vunpack.c.h.b16 %v159
    %v639 = vunpack.c.l.b16 %v160
    %v640 = vunpack.c.h.b16 %v160
    %v641 = vunpack.c.l.b16 %v161
    %v642 = vunpack.c.h.b16 %v161
    %v643 = vunpack.c.l.b16 %v162
    %v644 = vunpack.c.h.b16 %v162
    %v645 = vunpack.c.l.b16 %v163
    %v646 = vunpack.c.h.b16 %v163
    %v647 = vunpack.c.l.b16 %v164
    %v648 = vunpack.c.h.b16 %v164
    %v649 = vunpack.c.l.b16 %v165
    %v650 = vunpack.c.h.b16 %v165
    %v651 = vunpack.c.l.b16 %v166
    %v652 = vunpack.c.h.b16 %v166
    %v653 = vunpack.c.l.b16 %v167
    %v654 = vunpack.c.h.b16 %v167
    %v655 = vunpack.c.l.b16 %v168
    %v656 = vunpack.c.h.b16 %v168
    %v657 = vunpack.c.l.b16 %v169
    %v658 = vunpack.c.h.b16 %v169
    %v659 = vunpack.c.l.b16 %v170
    %v660 = vunpack.c.h.b16 %v170
    %v661 = vunpack.c.l.b16 %v171
    %v662 = vunpack.c.h.b16 %v171
    %v663 = vunpack.c.l.b16 %v172
    %v664 = vunpack.c.h.b16 %v172
    %v665 = vunpack.c.l.b16 %v173
    %v666 = vunpack.c.h.b16 %v173
    %v667 = vunpack.c.l.b16 %v174
    %v668 = vunpack.c.h.b16 %v174
    %v669 = vunpack.c.l.b16 %v175
    %v670 = vunpack.c.h.b16 %v175
    %v671 = vunpack.c.l.b16 %v176
    %v672 = vunpack.c.h.b16 %v176
    %v673 = vunpack.c.l.b16 %v177
    %v674 = vunpack.c.h.b16 %v177
    %v675 = vunpack.c.l.b16 %v178
    %v676 = vunpack.c.h.b16 %v178
    %v677 = vunpack.c.l.b16 %v179
    %v678 = vunpack.c.h.b16 %v179
    %v679 = vunpack.c.l.b16 %v180
    %v680 = vunpack.c.h.b16 %v180
    %v681 = vunpack.c.l.b16 %v181
    %v682 = vunpack.c.h.b16 %v181
    %v683 = vunpack.c.l.b16 %v182
    %v684 = vunpack.c.h.b16 %v182
    %v685 = vunpack.c.l.b16 %v183
    %v686 = vunpack.c.h.b16 %v183
    %v687 = vunpack.c.l.b16 %v184
    %v688 = vunpack.c.h.b16 %v184
    %v689 = vunpack.c.l.b16 %v185
    %v690 = vunpack.c.h.b16 %v185
    %v691 = vunpack.c.l.b16 %v186
    %v692 = vunpack.c.h.b16 %v186
    %v693 = vunpack.c.l.b16 %v187
    %v694 = vunpack.c.h.b16 %v187
    %v695 = vunpack.c.l.b16 %v188
    %v696 = vunpack.c.h.b16 %v188
    %v697 = vunpack.c.l.b16 %v189
    %v698 = vunpack.c.h.b16 %v189
    %v699 = vunpack.c.l.b16 %v190
    %v700 = vunpack.c.h.b16 %v190
    %v701 = vunpack.c.l.b16 %v191
    %v702 = vunpack.c.h.b16 %v191
    %v703 = vunpack.c.l.b16 %v192
    %v704 = vunpack.c.h.b16 %v192
    %v705 = vunpack.c.l.b16 %v193
    %v706 = vunpack.c.h.b16 %v193
    %v707 = vunpack.c.l.b16 %v194
    %v708 = vunpack.c.h.b16 %v194
    %v709 = vunpack.c.l.b16 %v195
    %v710 = vunpack.c.h.b16 %v195
    %v711 = vunpack.c.l.b16 %v196
    %v712 = vunpack.c.h.b16 %v196
    %v713 = vunpack.c.l.b16 %v197
    %v714 = vunpack.c.h.b16 %v197
    %v715 = vunpack.c.l.b16 %v198
    %v716 = vunpack.c.h.b16 %v198
    %v717 = vunpack.c.l.b16 %v199
    %v718 = vunpack.c.h.b16 %v199
    %v719 = vunpack.c.l.b16 %v200
    %v720 = vunpack.c.h.b16 %v200
    %v721 = vunpack.c.l.b16 %v201
    %v722 = vunpack.c.h.b16 %v201
    %v723 = vunpack.c.l.b16 %v202
    %v724 = vunpack.c.h.b16 %v202
    %v725 = vunpack.c.l.b16 %v203
    %v726 = vunpack.c.h.b16 %v203
    %v727 = vunpack.c.l.b16 %v204
    %v728 = vunpack.c.h.b16 %v204
    %v729 = vunpack.c.l.b16 %v205
    %v730 = vunpack.c.h.b16 %v205
    %v731 = vunpack.c.l.b16 %v206
    %v732 = vunpack.c.h.b16 %v206
    %v733 = vunpack.c.l.b16 %v207
    %v734 = vunpack.c.h.b16 %v207
    %v735 = vunpack.c.l.b16 %v208
    %v736 = vunpack.c.h.b16 %v208
    %v737 = vunpack.c.l.b16 %v209
    %v738 = vunpack.c.h.b16 %v209
    %v739 = vunpack.c.l.b16 %v210
    %v740 = vunpack.c.h.b16 %v210
    %v741 = vunpack.c.l.b16 %v211
    %v742 = vunpack.c.h.b16 %v211
    %v743 = vunpack.c.l.b16 %v212
    %v744 = vunpack.c.h.b16 %v212
    %v745 = vunpack.c.l.b16 %v213
    %v746 = vunpack.c.h.b16 %v213
    %v747 = vunpack.c.l.b16 %v214
    %v748 = vunpack.c.h.b16 %v214
    %v749 = vunpack.c.l.b16 %v215
    %v750 = vunpack.c.h.b16 %v215
    %v751 = vunpack.c.l.b16 %v216
    %v752 = vunpack.c.h.b16 %v216
    %v753 = vunpack.c.l.b16 %v217
    %v754 = vunpack.c.h.b16 %v217
    %v755 = vunpack.c.l.b16 %v218
    %v756 = vunpack.c.h.b16 %v218
    %v757 = vunpack.c.l.b16 %v219
    %v758 = vunpack.c.h.b16 %v219
    %v759 = vunpack.c.l.b16 %v220
    %v760 = vunpack.c.h.b16 %v220
    %v761 = vunpack.c.l.b16 %v221
    %v762 = vunpack.c.h.b16 %v221
    %v763 = vunpack.c.l.b16 %v222
    %v764 = vunpack.c.h.b16 %v222
    %v765 = vunpack.c.l.b16 %v223
    %v766 = vunpack.c.h.b16 %v223
    %v767 = vunpack.c.l.b16 %v224
    %v768 = vunpack.c.h.b16 %v224
    %v769 = vunpack.c.l.b16 %v225
    %v770 = vunpack.c.h.b16 %v225
    %v771 = vunpack.c.l.b16 %v226
    %v772 = vunpack.c.h.b16 %v226
    %v773 = vunpack.c.l.b16 %v227
    %v774 = vunpack.c.h.b16 %v227
    %v775 = vunpack.c.l.b16 %v228
    %v776 = vunpack.c.h.b16 %v228
    %v777 = vunpack.c.l.b16 %v229
    %v778 = vunpack.c.h.b16 %v229
    %v779 = vunpack.c.l.b16 %v230
    %v780 = vunpack.c.h.b16 %v230
    %v781 = vunpack.c.l.b16 %v231
    %v782 = vunpack.c.h.b16 %v231
    %v783 = vunpack.c.l.b16 %v232
    %v784 = vunpack.c.h.b16 %v232
    %v785 = vunpack.c.l.b16 %v233
    %v786 = vunpack.c.h.b16 %v233
    %v787 = vunpack.c.l.b16 %v234
    %v788 = vunpack.c.h.b16 %v234
    %v789 = vunpack.c.l.b16 %v235
    %v790 = vunpack.c.h.b16 %v235
    %v791 = vunpack.c.l.b16 %v236
    %v792 = vunpack.c.h.b16 %v236
    %v793 = vunpack.c.l.b16 %v237
    %v794 = vunpack.c.h.b16 %v237
    %v795 = vunpack.c.l.b16 %v238
    %v796 = vunpack.c.h.b16 %v238
    %v797 = vunpack.c.l.b16 %v239
    %v798 = vunpack.c.h.b16 %v239
    %v799 = vunpack.c.l.b16 %v240
    %v800 = vunpack.c.h.b16 %v240
    %v801 = vunpack.c.l.b16 %v241
    %v802 = vunpack.c.h.b16 %v241
    %v803 = vunpack.c.l.b16 %v242
    %v804 = vunpack.c.h.b16 %v242
    %v805 = vunpack.c.l.b16 %v243
    %v806 = vunpack.c.h.b16 %v243
    %v807 = vunpack.c.l.b16 %v244
    %v808 = vunpack.c.h.b16 %v244
    %v809 = vunpack.c.l.b16 %v245
    %v810 = vunpack.c.h.b16 %v245
    %v811 = vunpack.c.l.b16 %v246
    %v812 = vunpack.c.h.b16 %v246
    %v813 = vunpack.c.l.b16 %v247
    %v814 = vunpack.c.h.b16 %v247
    %v815 = vunpack.c.l.b16 %v248
    %v816 = vunpack.c.h.b16 %v248
    %v817 = vunpack.c.l.b16 %v249
    %v818 = vunpack.c.h.b16 %v249
    %v819 = vunpack.c.l.b16 %v250
    %v820 = vunpack.c.h.b16 %v250
    %v821 = vunpack.c.l.b16 %v251
    %v822 = vunpack.c.h.b16 %v251
    %v823 = vunpack.c.l.b16 %v252
    %v824 = vunpack.c.h.b16 %v252
    %v825 = vunpack.c.l.b16 %v253
    %v826 = vunpack.c.h.b16 %v253
    %v827 = vunpack.c.l.b16 %v254
    %v828 = vunpack.c.h.b16 %v254
    %v829 = vunpack.c.l.b16 %v255
    %v830 = vunpack.c.h.b16 %v255
    %v831 = vunpack.c.l.b16 %v256
    %v832 = vunpack.c.h.b16 %v256
    %v833 = vunpack.c.l.b16 %v257
    %v834 = vunpack.c.h.b16 %v257
    %v835 = vunpack.c.l.b16 %v258
    %v836 = vunpack.c.h.b16 %v258
    %v837 = vunpack.c.l.b16 %v259
    %v838 = vunpack.c.h.b16 %v259
    %v839 = vunpack.c.l.b16 %v260
    %v840 = vunpack.c.h.b16 %v260
    %v841 = vunpack.c.l.b16 %v261
    %v842 = vunpack.c.h.b16 %v261
    %v843 = vunpack.c.l.b16 %v262
    %v844 = vunpack.c.h.b16 %v262
    %v845 = vunpack.c.l.b16 %v263
    %v846 = vunpack.c.h.b16 %v263
    %v847 = vunpack.c.l.b16 %v264
    %v848 = vunpack.c.h.b16 %v264
    %v849 = vunpack.c.l.b16 %v265
    %v850 = vunpack.c.h.b16 %v265
    %v851 = vunpack.c.l.b16 %v266
    %v852 = vunpack.c.h.b16 %v266
    %v853 = vunpack.c.l.b16 %v267
    %v854 = vunpack.c.h.b16 %v267
    %v855 = vunpack.c.l.b16 %v268
    %v856 = vunpack.c.h.b16 %v268
    %v857 = vunpack.c.l.b16 %v269
    %v858 = vunpack.c.h.b16 %v269
    %v859 = vunpack.c.l.b16 %v270
    %v860 = vunpack.c.h.b16 %v270
    %v861 = vunpack.c.l.b16 %v271
    %v862 = vunpack.c.h.b16 %v271
    %v863 = vunpack.c.l.b16 %v272
    %v864 = vunpack.c.h.b16 %v272
    %v865 = vunpack.c.l.b16 %v273
    %v866 = vunpack.c.h.b16 %v273
    %v867 = vunpack.c.l.b16 %v274
    %v868 = vunpack.c.h.b16 %v274
    %v869 = vunpack.c.l.b16 %v275
    %v870 = vunpack.c.h.b16 %v275
    %v871 = vunpack.c.l.b16 %v276
    %v872 = vunpack.c.h.b16 %v276
    %v873 = vunpack.c.l.b16 %v277
    %v874 = vunpack.c.h.b16 %v277
    %v875 = vunpack.c.l.b16 %v278
    %v876 = vunpack.c.h.b16 %v278
    %v877 = vunpack.c.l.b16 %v279
    %v878 = vunpack.c.h.b16 %v279
    %v879 = vunpack.c.l.b16 %v280
    %v880 = vunpack.c.h.b16 %v280
    %v881 = vunpack.c.l.b16 %v281
    %v882 = vunpack.c.h.b16 %v281
    %v883 = vunpack.c.l.b16 %v282
    %v884 = vunpack.c.h.b16 %v282
    %v885 = vunpack.c.l.b16 %v283
    %v886 = vunpack.c.h.b16 %v283
    %v887 = vunpack.c.l.b16 %v284
    %v888 = vunpack.c.h.b16 %v284
    %v889 = vunpack.c.l.b16 %v285
    %v890 = vunpack.c.h.b16 %v285
    %v891 = vunpack.c.l.b16 %v286
    %v892 = vunpack.c.h.b16 %v286
    %v893 = vunpack.c.l.b16 %v287
    %v894 = vunpack.c.h.b16 %v287
    %v895 = vunpack.c.l.b16 %v288
    %v896 = vunpack.c.h.b16 %v288
    %v897 = vunpack.c.l.b16 %v289
    %v898 = vunpack.c.h.b16 %v289
    %v899 = vunpack.c.l.b16 %v290
    %v900 = vunpack.c.h.b16 %v290
    %v901 = vunpack.c.l.b16 %v291
    %v902 = vunpack.c.h.b16 %v291
    %v903 = vunpack.c.l.b16 %v292
    %v904 = vunpack.c.h.b16 %v292
    %v905 = vunpack.c.l.b16 %v293
    %v906 = vunpack.c.h.b16 %v293
    %v907 = vunpack.c.l.b16 %v294
    %v908 = vunpack.c.h.b16 %v294
    %v909 = vunpack.c.l.b16 %v295
    %v910 = vunpack.c.h.b16 %v295
    %v911 = vunpack.c.l.b16 %v296
    %v912 = vunpack.c.h.b16 %v296
    %v913 = vunpack.c.l.b16 %v297
    %v914 = vunpack.c.h.b16 %v297
    %v915 = vunpack.c.l.b16 %v298
    %v916 = vunpack.c.h.b16 %v298
    %v917 = vunpack.c.l.b16 %v299
    %v918 = vunpack.c.h.b16 %v299
    %v919 = vunpack.c.l.b16 %v300
    %v920 = vunpack.c.h.b16 %v300
    %v921 = vunpack.c.l.b16 %v301
    %v922 = vunpack.c.h.b16 %v301
    %v923 = vunpack.c.l.b16 %v302
    %v924 = vunpack.c.h.b16 %v302
    %v925 = vunpack.c.l.b16 %v303
    %v926 = vunpack.c.h.b16 %v303
    %v927 = vunpack.c.l.b16 %v304
    %v928 = vunpack.c.h.b16 %v304
    %v929 = vunpack.c.l.b16 %v305
    %v930 = vunpack.c.h.b16 %v305
    %v931 = vunpack.c.l.b16 %v306
    %v932 = vunpack.c.h.b16 %v306
    %v933 = vunpack.c.l.b16 %v307
    %v934 = vunpack.c.h.b16 %v307
    %v935 = vunpack.c.l.b16 %v308
    %v936 = vunpack.c.h.b16 %v308
    %v937 = vunpack.c.l.b16 %v309
    %v938 = vunpack.c.h.b16 %v309
    %v939 = vunpack.c.l.b16 %v310
    %v940 = vunpack.c.h.b16 %v310
    %v941 = vunpack.c.l.b16 %v311
    %v942 = vunpack.c.h.b16 %v311
    %v943 = vunpack.c.l.b16 %v312
    %v944 = vunpack.c.h.b16 %v312
    %v945 = vunpack.c.l.b16 %v313
    %v946 = vunpack.c.h.b16 %v313
    %v947 = vunpack.c.l.b16 %v314
    %v948 = vunpack.c.h.b16 %v314
    %v949 = vpack.c.b16 %v561, %v557
    %v950 = vpack.c.b16 %v562, %v558
    %v951 = vpack.c.b16 %v563, %v559
    %v952 = vpack.c.b16 %v564, %v560
    %v953 = vpack.c.b16 %v569, %v565
    %v954 = vpack.c.b16 %v570, %v566
    %v955 = vpack.c.b16 %v571, %v567
    %v956 = vpack.c.b16 %v572, %v568
    %v957 = vpack.c.b16 %v577, %v573
    %v958 = vpack.c.b16 %v578, %v574
    %v959 = vpack.c.b16 %v579, %v575
    %v960 = vpack.c.b16 %v580, %v576
    %v961 = vpack.c.b16 %v585, %v581
    %v962 = vpack.c.b16 %v586, %v582
    %v963 = vpack.c.b16 %v587, %v583
    %v964 = vpack.c.b16 %v588, %v584
    %v965 = vpack.c.b16 %v593, %v589
    %v966 = vpack.c.b16 %v594, %v590
    %v967 = vpack.c.b16 %v595, %v591
    %v968 = vpack.c.b16 %v596, %v592
    %v969 = vpack.c.b16 %v601, %v597
    %v970 = vpack.c.b16 %v602, %v598
    %v971 = vpack.c.b16 %v603, %v599
    %v972 = vpack.c.b16 %v604, %v600
    %v973 = vpack.c.b16 %v609, %v605
    %v974 = vpack.c.b16 %v610, %v606
    %v975 = vpack.c.b16 %v611, %v607
    %v976 = vpack.c.b16 %v612, %v608
    %v977 = vpack.c.b16 %v617, %v613
    %v978 = vpack.c.b16 %v618, %v614
    %v979 = vpack.c.b16 %v619, %v615
    %v980 = vpack.c.b16 %v620, %v616
    %v981 = vpack.c.b16 %v625, %v621
    %v982 = vpack.c.b16 %v626, %v622
    %v983 = vpack.c.b16 %v627, %v623
    %v984 = vpack.c.b16 %v628, %v624
    %v985 = vpack.c.b16 %v633, %v629
    %v986 = vpack.c.b16 %v634, %v630
    %v987 = vpack.c.b16 %v635, %v631
    %v988 = vpack.c.b16 %v636, %v632
    %v989 = vpack.c.b16 %v641, %v637
    %v990 = vpack.c.b16 %v642, %v638
    %v991 = vpack.c.b16 %v643, %v639
    %v992 = vpack.c.b16 %v644, %v640
    %v993 = vpack.c.b16 %v649, %v645
    %v994 = vpack.c.b16 %v650, %v646
    %v995 = vpack.c.b16 %v651, %v647
    %v996 = vpack.c.b16 %v652, %v648
    %v997 = vpack.c.b16 %v657, %v653
    %v998 = vpack.c.b16 %v658, %v654
    %v999 = vpack.c.b16 %v659, %v655
    %v1000 = vpack.c.b16 %v660, %v656
    %v1001 = vpack.c.b16 %v665, %v661
    %v1002 = vpack.c.b16 %v666, %v662
    %v1003 = vpack.c.b16 %v667, %v663
    %v1004 = vpack.c.b16 %v668, %v664
    %v1005 = vpack.c.b16 %v673, %v669
    %v1006 = vpack.c.b16 %v674, %v670
    %v1007 = vpack.c.b16 %v675, %v671
    %v1008 = vpack.c.b16 %v676, %v672
    %v1009 = vpack.c.b16 %v681, %v677
    %v1010 = vpack.c.b16 %v682, %v678
    %v1011 = vpack.c.b16 %v683, %v679
    %v1012 = vpack.c.b16 %v684, %v680
    %v1013 = vpack.c.b16 %v689, %v685
    %v1014 = vpack.c.b16 %v690, %v686
    %v1015 = vpack.c.b16 %v691, %v687
    %v1016 = vpack.c.b16 %v692, %v688
    %v1017 = vpack.c.b16 %v697, %v693
    %v1018 = vpack.c.b16 %v698, %v694
    %v1019 = vpack.c.b16 %v699, %v695
    %v1020 = vpack.c.b16 %v700, %v696
    %v1021 = vpack.c.b16 %v705, %v701
    %v1022 = vpack.c.b16 %v706, %v702
    %v1023 = vpack.c.b16 %v707, %v703
    %v1024 = vpack.c.b16 %v708, %v704
    %v1025 = vpack.c.b16 %v713, %v709
    %v1026 = vpack.c.b16 %v714, %v710
    %v1027 = vpack.c.b16 %v715, %v711
    %v1028 = vpack.c.b16 %v716, %v712
    %v1029 = vpack.c.b16 %v721, %v717
    %v1030 = vpack.c.b16 %v722, %v718
    %v1031 = vpack.c.b16 %v723, %v719
    %v1032 = vpack.c.b16 %v724, %v720
    %v1033 = vpack.c.b16 %v729, %v725
    %v1034 = vpack.c.b16 %v730, %v726
    %v1035 = vpack.c.b16 %v731, %v727
    %v1036 = vpack.c.b16 %v732, %v728
    %v1037 = vpack.c.b16 %v737, %v733
    %v1038 = vpack.c.b16 %v738, %v734
    %v1039 = vpack.c.b16 %v739, %v735
    %v1040 = vpack.c.b16 %v740, %v736
    %v1041 = vpack.c.b16 %v745, %v741
    %v1042 = vpack.c.b16 %v746, %v742
    %v1043 = vpack.c.b16 %v747, %v743
    %v1044 = vpack.c.b16 %v748, %v744
    %v1045 = vpack.c.b16 %v753, %v749
    %v1046 = vpack.c.b16 %v754, %v750
    %v1047 = vpack.c.b16 %v755, %v751
    %v1048 = vpack.c.b16 %v756, %v752
    %v1049 = vpack.c.b16 %v761, %v757
    %v1050 = vpack.c.b16 %v762, %v758
    %v1051 = vpack.c.b16 %v763, %v759
    %v1052 = vpack.c.b16 %v764, %v760
    %v1053 = vpack.c.b16 %v769, %v765
    %v1054 = vpack.c.b16 %v770, %v766
    %v1055 = vpack.c.b16 %v771, %v767
    %v1056 = vpack.c.b16 %v772, %v768
    %v1057 = vpack.c.b16 %v777, %v773
    %v1058 = vpack.c.b16 %v778, %v774
    %v1059 = vpack.c.b16 %v779, %v775
    %v1060 = vpack.c.b16 %v780, %v776
    %v1061 = vpack.c.b16 %v785, %v781
    %v1062 = vpack.c.b16 %v786, %v782
    %v1063 = vpack.c.b16 %v787, %v783
    %v1064 = vpack.c.b16 %v788, %v784
    %v1065 = vpack.c.b16 %v793, %v789
    %v1066 = vpack.c.b16 %v794, %v790
    %v1067 = vpack.c.b16 %v795, %v791
    %v1068 = vpack.c.b16 %v796, %v792
    %v1069 = vpack.c.b16 %v801, %v797
    %v1070 = vpack.c.b16 %v802, %v798
    %v1071 = vpack.c.b16 %v803, %v799
    %v1072 = vpack.c.b16 %v804, %v800
    %v1073 = vpack.c.b16 %v809, %v805
    %v1074 = vpack.c.b16 %v810, %v806
    %v1075 = vpack.c.b16 %v811, %v807
    %v1076 = vpack.c.b16 %v812, %v808
    %v1077 = vpack.c.b16 %v817, %v813
    %v1078 = vpack.c.b16 %v818, %v814
    %v1079 = vpack.c.b16 %v819, %v815
    %v1080 = vpack.c.b16 %v820, %v816
    %v1081 = vpack.c.b16 %v825, %v821
    %v1082 = vpack.c.b16 %v826, %v822
    %v1083 = vpack.c.b16 %v827, %v823
    %v1084 = vpack.c.b16 %v828, %v824
    %v1085 = vpack.c.b16 %v833, %v829
    %v1086 = vpack.c.b16 %v834, %v830
    %v1087 = vpack.c.b16 %v835, %v831
    %v1088 = vpack.c.b16 %v836, %v832
    %v1089 = vpack.c.b16 %v841, %v837
    %v1090 = vpack.c.b16 %v842, %v838
    %v1091 = vpack.c.b16 %v843, %v839
    %v1092 = vpack.c.b16 %v844, %v840
    %v1093 = vpack.c.b16 %v849, %v845
    %v1094 = vpack.c.b16 %v850, %v846
    %v1095 = vpack.c.b16 %v851, %v847
    %v1096 = vpack.c.b16 %v852, %v848
    %v1097 = vpack.c.b16 %v857, %v853
    %v1098 = vpack.c.b16 %v858, %v854
    %v1099 = vpack.c.b16 %v859, %v855
    %v1100 = vpack.c.b16 %v860, %v856
    %v1101 = vpack.c.b16 %v865, %v861
    %v1102 = vpack.c.b16 %v866, %v862
    %v1103 = vpack.c.b16 %v867, %v863
    %v1104 = vpack.c.b16 %v868, %v864
    %v1105 = vpack.c.b16 %v873, %v869
    %v1106 = vpack.c.b16 %v874, %v870
    %v1107 = vpack.c.b16 %v875, %v871
    %v1108 = vpack.c.b16 %v876, %v872
    %v1109 = vpack.c.b16 %v881, %v877
    %v1110 = vpack.c.b16 %v882, %v878
    %v1111 = vpack.c.b16 %v883, %v879
    %v1112 = vpack.c.b16 %v884, %v880
    %v1113 = vpack.c.b16 %v889, %v885
    %v1114 = vpack.c.b16 %v890, %v886
    %v1115 = vpack.c.b16 %v891, %v887
    %v1116 = vpack.c.b16 %v892, %v888
    %v1117 = vpack.c.b16 %v897, %v893
    %v1118 = vpack.c.b16 %v898, %v894
    %v1119 = vpack.c.b16 %v899, %v895
    %v1120 = vpack.c.b16 %v900, %v896
    %v1121 = vpack.c.b16 %v905, %v901
    %v1122 = vpack.c.b16 %v906, %v902
    %v1123 = vpack.c.b16 %v907, %v903
    %v1124 = vpack.c.b16 %v908, %v904
    %v1125 = vpack.c.b16 %v913, %v909
    %v1126 = vpack.c.b16 %v914, %v910
    %v1127 = vpack.c.b16 %v915, %v911
    %v1128 = vpack.c.b16 %v916, %v912
    %v1129 = vpack.c.b16 %v921, %v917
    %v1130 = vpack.c.b16 %v922, %v918
    %v1131 = vpack.c.b16 %v923, %v919
    %v1132 = vpack.c.b16 %v924, %v920
    %v1133 = vpack.c.b16 %v929, %v925
    %v1134 = vpack.c.b16 %v930, %v926
    %v1135 = vpack.c.b16 %v931, %v927
    %v1136 = vpack.c.b16 %v932, %v928
    %v1137 = vpack.c.b16 %v937, %v933
    %v1138 = vpack.c.b16 %v938, %v934
    %v1139 = vpack.c.b16 %v939, %v935
    %v1140 = vpack.c.b16 %v940, %v936
    %v1141 = vpack.c.b16 %v945, %v941
    %v1142 = vpack.c.b16 %v946, %v942
    %v1143 = vpack.c.b16 %v947, %v943
    %v1144 = vpack.c.b16 %v948, %v944
    %vm1341 = vcmask 130048
    %v1343 = vsel %vm1341, %v354, 0
    %1345 = vmatprep.subr.bf16.mxu0 %v950
    %1346 = vmatpush1.bf16.msra.mxu0 %v949
    %1347 = vmatprep.subr.bf16.mxu0 %v954
    %1348 = vmatpush1.bf16.msra.mxu0 %v953
    %1349 = vmatprep.subr.bf16.mxu0 %v958
    %1350 = vmatpush1.bf16.msra.mxu0 %v957
    %1351 = vmatprep.subr.bf16.mxu0 %v962
    %1352 = vmatpush1.bf16.msra.mxu0 %v961
    %1353 = vmatprep.subr.bf16.mxu0 %v966
    %1354 = vmatpush1.bf16.msra.mxu0 %v965
    %1355 = vmatprep.subr.bf16.mxu0 %v970
    %1356 = vmatpush1.bf16.msra.mxu0 %v969
    %1357 = vmatprep.subr.bf16.mxu0 %v974
    %1358 = vmatpush1.bf16.msra.mxu0 %v973
    %1359 = vmatprep.subr.bf16.mxu0 %v978
    %1360 = vmatpush1.bf16.msra.mxu0 %v977
    %1361 = vmatprep.subr.bf16.mxu0 %v982
    %1362 = vmatpush1.bf16.msra.mxu0 %v981
    %1363 = vmatprep.subr.bf16.mxu0 %v986
    %1364 = vmatpush1.bf16.msra.mxu0 %v985
    %1365 = vmatprep.subr.bf16.mxu0 %v990
    %1366 = vmatpush1.bf16.msra.mxu0 %v989
    %1367 = vmatprep.subr.bf16.mxu0 %v994
    %1368 = vmatpush1.bf16.msra.mxu0 %v993
    %1369 = vmatprep.subr.bf16.mxu0 %v998
    %1370 = vmatpush1.bf16.msra.mxu0 %v997
    %1371 = vmatprep.subr.bf16.mxu0 %v1002
    %1372 = vmatpush1.bf16.msra.mxu0 %v1001
    %1373 = vmatprep.subr.bf16.mxu0 %v1006
    %1374 = vmatpush1.bf16.msra.mxu0 %v1005
    %1375 = vmatprep.subr.bf16.mxu0 %v1010
    %1376 = vmatpush1.bf16.msra.mxu0 %v1009
    %1377 = vmatprep.mubr.bf16.mxu0 %v349
    %1378 = vmatmul.mubr.bf16.gmra.mrb[0].mxu0 %v348
    %v1379 = vpop.f32.mrb[0].mxu0
    %v1380 = vadd.f32 %v320, %v1379
    %v1381 = vpop.f32.mrb[0].mxu0
    %v1382 = vadd.f32 %v324, %v1381
    %v1383 = vpop.f32.mrb[0].mxu0
    %v1384 = vpop.f32.mrb[0].mxu0
    %1385 = vdwg.mxu0
    %1386 = vmatprep.subr.bf16.mxu0 %v1014
    %1387 = vmatpush1.bf16.msra.mxu0 %v1013
    %1388 = vmatprep.subr.bf16.mxu0 %v1018
    %1389 = vmatpush1.bf16.msra.mxu0 %v1017
    %1390 = vmatprep.subr.bf16.mxu0 %v1022
    %1391 = vmatpush1.bf16.msra.mxu0 %v1021
    %1392 = vmatprep.subr.bf16.mxu0 %v1026
    %1393 = vmatpush1.bf16.msra.mxu0 %v1025
    %1394 = vmatprep.subr.bf16.mxu0 %v1030
    %1395 = vmatpush1.bf16.msra.mxu0 %v1029
    %1396 = vmatprep.subr.bf16.mxu0 %v1034
    %1397 = vmatpush1.bf16.msra.mxu0 %v1033
    %1398 = vmatprep.subr.bf16.mxu0 %v1038
    %1399 = vmatpush1.bf16.msra.mxu0 %v1037
    %1400 = vmatprep.subr.bf16.mxu0 %v1042
    %1401 = vmatpush1.bf16.msra.mxu0 %v1041
    %1402 = vmatprep.subr.bf16.mxu0 %v1046
    %1403 = vmatpush1.bf16.msra.mxu0 %v1045
    %1404 = vmatprep.subr.bf16.mxu0 %v1050
    %1405 = vmatpush1.bf16.msra.mxu0 %v1049
    %1406 = vmatprep.subr.bf16.mxu0 %v1054
    %1407 = vmatpush1.bf16.msra.mxu0 %v1053
    %1408 = vmatprep.subr.bf16.mxu0 %v1058
    %1409 = vmatpush1.bf16.msra.mxu0 %v1057
    %1410 = vmatprep.subr.bf16.mxu0 %v1062
    %1411 = vmatpush1.bf16.msra.mxu0 %v1061
    %1412 = vmatprep.subr.bf16.mxu0 %v1066
    %1413 = vmatpush1.bf16.msra.mxu0 %v1065
    %1414 = vmatprep.subr.bf16.mxu0 %v1070
    %1415 = vmatpush1.bf16.msra.mxu0 %v1069
    %1416 = vmatprep.subr.bf16.mxu0 %v1074
    %1417 = vmatpush1.bf16.msra.mxu0 %v1073
    %1418 = vmatprep.mubr.bf16.mxu0 %v351
    %1419 = vmatmul.mubr.bf16.gmra.mrb[0].mxu0 %v350
    %v1420 = vpop.f32.mrb[0].mxu0
    %v1421 = vadd.f32 %v1380, %v1420
    %v1422 = vpop.f32.mrb[0].mxu0
    %v1423 = vadd.f32 %v1382, %v1422
    %v1424 = vpop.f32.mrb[0].mxu0
    %v1425 = vpop.f32.mrb[0].mxu0
    %1426 = vdwg.mxu0
    %1427 = vmatprep.subr.bf16.mxu0 %v1078
    %1428 = vmatpush1.bf16.msra.mxu0 %v1077
    %1429 = vmatprep.subr.bf16.mxu0 %v1082
    %1430 = vmatpush1.bf16.msra.mxu0 %v1081
    %1431 = vmatprep.subr.bf16.mxu0 %v1086
    %1432 = vmatpush1.bf16.msra.mxu0 %v1085
    %1433 = vmatprep.subr.bf16.mxu0 %v1090
    %1434 = vmatpush1.bf16.msra.mxu0 %v1089
    %1435 = vmatprep.subr.bf16.mxu0 %v1094
    %1436 = vmatpush1.bf16.msra.mxu0 %v1093
    %1437 = vmatprep.subr.bf16.mxu0 %v1098
    %1438 = vmatpush1.bf16.msra.mxu0 %v1097
    %1439 = vmatprep.subr.bf16.mxu0 %v1102
    %1440 = vmatpush1.bf16.msra.mxu0 %v1101
    %1441 = vmatprep.subr.bf16.mxu0 %v1106
    %1442 = vmatpush1.bf16.msra.mxu0 %v1105
    %1443 = vmatprep.subr.bf16.mxu0 %v1110
    %1444 = vmatpush1.bf16.msra.mxu0 %v1109
    %1445 = vmatprep.subr.bf16.mxu0 %v1114
    %1446 = vmatpush1.bf16.msra.mxu0 %v1113
    %1447 = vmatprep.subr.bf16.mxu0 %v1118
    %1448 = vmatpush1.bf16.msra.mxu0 %v1117
    %1449 = vmatprep.subr.bf16.mxu0 %v1122
    %1450 = vmatpush1.bf16.msra.mxu0 %v1121
    %1451 = vmatprep.subr.bf16.mxu0 %v1126
    %1452 = vmatpush1.bf16.msra.mxu0 %v1125
    %1453 = vmatprep.subr.bf16.mxu0 %v1130
    %1454 = vmatpush1.bf16.msra.mxu0 %v1129
    %1455 = vmatprep.subr.bf16.mxu0 %v1134
    %1456 = vmatpush1.bf16.msra.mxu0 %v1133
    %1457 = vmatprep.subr.bf16.mxu0 %v1138
    %1458 = vmatpush1.bf16.msra.mxu0 %v1137
    %1459 = vmatprep.mubr.bf16.mxu0 %v353
    %1460 = vmatmul.mubr.bf16.gmra.mrb[0].mxu0 %v352
    %v1461 = vpop.f32.mrb[0].mxu0
    %v1462 = vadd.f32 %v1421, %v1461
    %v1463 = vpop.f32.mrb[0].mxu0
    %v1464 = vadd.f32 %v1423, %v1463
    %v1465 = vpop.f32.mrb[0].mxu0
    %v1466 = vpop.f32.mrb[0].mxu0
    %1467 = vdwg.mxu0
    %1468 = vmatprep.subr.bf16.mxu0 %v1142
    %1469 = vmatpush1.bf16.msra.mxu0 %v1141
    %1470 = vmatprep.subr.bf16.mxu0 0
    %1471 = vmatpush1.bf16.msra.mxu0 0
    %1472 = vmatprep.subr.bf16.mxu0 0
    %1473 = vmatpush1.bf16.msra.mxu0 0
    %1474 = vmatprep.subr.bf16.mxu0 0
    %1475 = vmatpush1.bf16.msra.mxu0 0
    %1476 = vmatprep.subr.bf16.mxu0 0
    %1477 = vmatpush1.bf16.msra.mxu0 0
    %1478 = vmatprep.subr.bf16.mxu0 0
    %1479 = vmatpush1.bf16.msra.mxu0 0
    %1480 = vmatprep.subr.bf16.mxu0 0
    %1481 = vmatpush1.bf16.msra.mxu0 0
    %1482 = vmatprep.subr.bf16.mxu0 0
    %1483 = vmatpush1.bf16.msra.mxu0 0
    %1484 = vmatprep.subr.bf16.mxu0 0
    %1485 = vmatpush1.bf16.msra.mxu0 0
    %1486 = vmatprep.subr.bf16.mxu0 0
    %1487 = vmatpush1.bf16.msra.mxu0 0
    %1488 = vmatprep.subr.bf16.mxu0 0
    %1489 = vmatpush1.bf16.msra.mxu0 0
    %1490 = vmatprep.subr.bf16.mxu0 0
    %1491 = vmatpush1.bf16.msra.mxu0 0
    %1492 = vmatprep.subr.bf16.mxu0 0
    %1493 = vmatpush1.bf16.msra.mxu0 0
    %1494 = vmatprep.subr.bf16.mxu0 0
    %1495 = vmatpush1.bf16.msra.mxu0 0
    %1496 = vmatprep.subr.bf16.mxu0 0
    %1497 = vmatpush1.bf16.msra.mxu0 0
    %1498 = vmatprep.subr.bf16.mxu0 0
    %1499 = vmatpush1.bf16.msra.mxu0 0
    %1500 = vmatprep.mubr.bf16.mxu0 0
    %1501 = vmatmul.mubr.bf16.gmra.mrb[0].mxu0 %v1343
    %v1502 = vpop.f32.mrb[0].mxu0
    %v1503 = vadd.f32 %v1462, %v1502
    %v1504 = vpop.f32.mrb[0].mxu0
    %v1505 = vadd.f32 %v1464, %v1504
    %v1506 = vpop.f32.mrb[0].mxu0
    %v1507 = vpop.f32.mrb[0].mxu0
    %1508 = vdwg.mxu0
    %1509 = vmatprep.subr.bf16.mxu0 %v952
    %1510 = vmatpush1.bf16.msra.mxu0 %v951
    %1511 = vmatprep.subr.bf16.mxu0 %v956
    %1512 = vmatpush1.bf16.msra.mxu0 %v955
    %1513 = vmatprep.subr.bf16.mxu0 %v960
    %1514 = vmatpush1.bf16.msra.mxu0 %v959
    %1515 = vmatprep.subr.bf16.mxu0 %v964
    %1516 = vmatpush1.bf16.msra.mxu0 %v963
    %1517 = vmatprep.subr.bf16.mxu0 %v968
    %1518 = vmatpush1.bf16.msra.mxu0 %v967
    %1519 = vmatprep.subr.bf16.mxu0 %v972
    %1520 = vmatpush1.bf16.msra.mxu0 %v971
    %1521 = vmatprep.subr.bf16.mxu0 %v976
    %1522 = vmatpush1.bf16.msra.mxu0 %v975
    %1523 = vmatprep.subr.bf16.mxu0 %v980
    %1524 = vmatpush1.bf16.msra.mxu0 %v979
    %1525 = vmatprep.subr.bf16.mxu0 %v984
    %1526 = vmatpush1.bf16.msra.mxu0 %v983
    %1527 = vmatprep.subr.bf16.mxu0 %v988
    %1528 = vmatpush1.bf16.msra.mxu0 %v987
    %1529 = vmatprep.subr.bf16.mxu0 %v992
    %1530 = vmatpush1.bf16.msra.mxu0 %v991
    %1531 = vmatprep.subr.bf16.mxu0 %v996
    %1532 = vmatpush1.bf16.msra.mxu0 %v995
    %1533 = vmatprep.subr.bf16.mxu0 %v1000
    %1534 = vmatpush1.bf16.msra.mxu0 %v999
    %1535 = vmatprep.subr.bf16.mxu0 %v1004
    %1536 = vmatpush1.bf16.msra.mxu0 %v1003
    %1537 = vmatprep.subr.bf16.mxu0 %v1008
    %1538 = vmatpush1.bf16.msra.mxu0 %v1007
    %1539 = vmatprep.subr.bf16.mxu0 %v1012
    %1540 = vmatpush1.bf16.msra.mxu0 %v1011
    %1541 = vmatprep.mubr.bf16.mxu0 %v349
    %1542 = vmatmul.mubr.bf16.gmra.mrb[0].mxu0 %v348
    %v1543 = vpop.f32.mrb[0].mxu0
    %v1544 = vadd.f32 %v328, %v1543
    %v1545 = vpop.f32.mrb[0].mxu0
    %v1546 = vadd.f32 %v332, %v1545
    %v1547 = vpop.f32.mrb[0].mxu0
    %v1548 = vpop.f32.mrb[0].mxu0
    %1549 = vdwg.mxu0
    %1550 = vmatprep.subr.bf16.mxu0 %v1016
    %1551 = vmatpush1.bf16.msra.mxu0 %v1015
    %1552 = vmatprep.subr.bf16.mxu0 %v1020
    %1553 = vmatpush1.bf16.msra.mxu0 %v1019
    %1554 = vmatprep.subr.bf16.mxu0 %v1024
    %1555 = vmatpush1.bf16.msra.mxu0 %v1023
    %1556 = vmatprep.subr.bf16.mxu0 %v1028
    %1557 = vmatpush1.bf16.msra.mxu0 %v1027
    %1558 = vmatprep.subr.bf16.mxu0 %v1032
    %1559 = vmatpush1.bf16.msra.mxu0 %v1031
    %1560 = vmatprep.subr.bf16.mxu0 %v1036
    %1561 = vmatpush1.bf16.msra.mxu0 %v1035
    %1562 = vmatprep.subr.bf16.mxu0 %v1040
    %1563 = vmatpush1.bf16.msra.mxu0 %v1039
    %1564 = vmatprep.subr.bf16.mxu0 %v1044
    %1565 = vmatpush1.bf16.msra.mxu0 %v1043
    %1566 = vmatprep.subr.bf16.mxu0 %v1048
    %1567 = vmatpush1.bf16.msra.mxu0 %v1047
    %1568 = vmatprep.subr.bf16.mxu0 %v1052
    %1569 = vmatpush1.bf16.msra.mxu0 %v1051
    %1570 = vmatprep.subr.bf16.mxu0 %v1056
    %1571 = vmatpush1.bf16.msra.mxu0 %v1055
    %1572 = vmatprep.subr.bf16.mxu0 %v1060
    %1573 = vmatpush1.bf16.msra.mxu0 %v1059
    %1574 = vmatprep.subr.bf16.mxu0 %v1064
    %1575 = vmatpush1.bf16.msra.mxu0 %v1063
    %1576 = vmatprep.subr.bf16.mxu0 %v1068
    %1577 = vmatpush1.bf16.msra.mxu0 %v1067
    %1578 = vmatprep.subr.bf16.mxu0 %v1072
    %1579 = vmatpush1.bf16.msra.mxu0 %v1071
    %1580 = vmatprep.subr.bf16.mxu0 %v1076
    %1581 = vmatpush1.bf16.msra.mxu0 %v1075
    %1582 = vmatprep.mubr.bf16.mxu0 %v351
    %1583 = vmatmul.mubr.bf16.gmra.mrb[0].mxu0 %v350
    %v1584 = vpop.f32.mrb[0].mxu0
    %v1585 = vadd.f32 %v1544, %v1584
    %v1586 = vpop.f32.mrb[0].mxu0
    %v1587 = vadd.f32 %v1546, %v1586
    %v1588 = vpop.f32.mrb[0].mxu0
    %v1589 = vpop.f32.mrb[0].mxu0
    %1590 = vdwg.mxu0
    %1591 = vmatprep.subr.bf16.mxu0 %v1080
    %1592 = vmatpush1.bf16.msra.mxu0 %v1079
    %1593 = vmatprep.subr.bf16.mxu0 %v1084
    %1594 = vmatpush1.bf16.msra.mxu0 %v1083
    %1595 = vmatprep.subr.bf16.mxu0 %v1088
    %1596 = vmatpush1.bf16.msra.mxu0 %v1087
    %1597 = vmatprep.subr.bf16.mxu0 %v1092
    %1598 = vmatpush1.bf16.msra.mxu0 %v1091
    %1599 = vmatprep.subr.bf16.mxu0 %v1096
    %1600 = vmatpush1.bf16.msra.mxu0 %v1095
    %1601 = vmatprep.subr.bf16.mxu0 %v1100
    %1602 = vmatpush1.bf16.msra.mxu0 %v1099
    %1603 = vmatprep.subr.bf16.mxu0 %v1104
    %1604 = vmatpush1.bf16.msra.mxu0 %v1103
    %1605 = vmatprep.subr.bf16.mxu0 %v1108
    %1606 = vmatpush1.bf16.msra.mxu0 %v1107
    %1607 = vmatprep.subr.bf16.mxu0 %v1112
    %1608 = vmatpush1.bf16.msra.mxu0 %v1111
    %1609 = vmatprep.subr.bf16.mxu0 %v1116
    %1610 = vmatpush1.bf16.msra.mxu0 %v1115
    %1611 = vmatprep.subr.bf16.mxu0 %v1120
    %1612 = vmatpush1.bf16.msra.mxu0 %v1119
    %1613 = vmatprep.subr.bf16.mxu0 %v1124
    %1614 = vmatpush1.bf16.msra.mxu0 %v1123
    %1615 = vmatprep.subr.bf16.mxu0 %v1128
    %1616 = vmatpush1.bf16.msra.mxu0 %v1127
    %1617 = vmatprep.subr.bf16.mxu0 %v1132
    %1618 = vmatpush1.bf16.msra.mxu0 %v1131
    %1619 = vmatprep.subr.bf16.mxu0 %v1136
    %1620 = vmatpush1.bf16.msra.mxu0 %v1135
    %1621 = vmatprep.subr.bf16.mxu0 %v1140
    %1622 = vmatpush1.bf16.msra.mxu0 %v1139
    %1623 = vmatprep.mubr.bf16.mxu0 %v353
    %1624 = vmatmul.mubr.bf16.gmra.mrb[0].mxu0 %v352
    %v1625 = vpop.f32.mrb[0].mxu0
    %v1626 = vadd.f32 %v1585, %v1625
    %v1627 = vpop.f32.mrb[0].mxu0
    %v1628 = vadd.f32 %v1587, %v1627
    %v1629 = vpop.f32.mrb[0].mxu0
    %v1630 = vpop.f32.mrb[0].mxu0
    %1631 = vdwg.mxu0
    %1632 = vmatprep.subr.bf16.mxu0 %v1144
    %1633 = vmatpush1.bf16.msra.mxu0 %v1143
    %1634 = vmatprep.subr.bf16.mxu0 0
    %1635 = vmatpush1.bf16.msra.mxu0 0
    %1636 = vmatprep.subr.bf16.mxu0 0
    %1637 = vmatpush1.bf16.msra.mxu0 0
    %1638 = vmatprep.subr.bf16.mxu0 0
    %1639 = vmatpush1.bf16.msra.mxu0 0
    %1640 = vmatprep.subr.bf16.mxu0 0
    %1641 = vmatpush1.bf16.msra.mxu0 0
    %1642 = vmatprep.subr.bf16.mxu0 0
    %1643 = vmatpush1.bf16.msra.mxu0 0
    %1644 = vmatprep.subr.bf16.mxu0 0
    %1645 = vmatpush1.bf16.msra.mxu0 0
    %1646 = vmatprep.subr.bf16.mxu0 0
    %1647 = vmatpush1.bf16.msra.mxu0 0
    %1648 = vmatprep.subr.bf16.mxu0 0
    %1649 = vmatpush1.bf16.msra.mxu0 0
    %1650 = vmatprep.subr.bf16.mxu0 0
    %1651 = vmatpush1.bf16.msra.mxu0 0
    %1652 = vmatprep.subr.bf16.mxu0 0
    %1653 = vmatpush1.bf16.msra.mxu0 0
    %1654 = vmatprep.subr.bf16.mxu0 0
    %1655 = vmatpush1.bf16.msra.mxu0 0
    %1656 = vmatprep.subr.bf16.mxu0 0
    %1657 = vmatpush1.bf16.msra.mxu0 0
    %1658 = vmatprep.subr.bf16.mxu0 0
    %1659 = vmatpush1.bf16.msra.mxu0 0
    %1660 = vmatprep.subr.bf16.mxu0 0
    %1661 = vmatpush1.bf16.msra.mxu0 0
    %1662 = vmatprep.subr.bf16.mxu0 0
    %1663 = vmatpush1.bf16.msra.mxu0 0
    %1664 = vmatprep.mubr.bf16.mxu0 0
    %1665 = vmatmul.mubr.bf16.gmra.mrb[0].mxu0 %v1343
    %v1666 = vpop.f32.mrb[0].mxu0
    %v1667 = vadd.f32 %v1626, %v1666
    %v1668 = vpop.f32.mrb[0].mxu0
    %v1669 = vadd.f32 %v1628, %v1668
    %v1670 = vpop.f32.mrb[0].mxu0
    %v1671 = vpop.f32.mrb[0].mxu0
    %1672 = vdwg.mxu0
    %v1673 = vmax.f32 %v1503, 0.0
    %v1674 = vmax.f32 %v1505, 0.0
    %v1675 = vmax.f32 %v1667, 0.0
    %v1676 = vmax.f32 %v1669, 0.0
    %v1677 = vpack.c.bf16 %v1673, %v1673
    %v1678 = vpack.c.bf16 %v1674, %v1674
    %v1679 = vpack.c.bf16 %v1675, %v1675
    %v1680 = vpack.c.bf16 %v1676, %v1676
    %v1681 = vld [vmem:[#allocation8] sm:$0xff]
    %v1682 = vld [vmem:[#allocation8 + $0x8] sm:$0xff]
    %v1683 = vld [vmem:[#allocation8 + $0x10] sm:$0xff]
    %v1684 = vld [vmem:[#allocation8 + $0x18] sm:$0xff]
    %v1685 = vld [vmem:[#allocation8 + $0x20] sm:$0xff]
    %v1686 = vld [vmem:[#allocation8 + $0x28] sm:$0xff]
    %v1687 = vld [vmem:[#allocation8 + $0x30] sm:$0xff]
    %v1688 = vld [vmem:[#allocation8 + $0x38] sm:$0xff]
    %v1689 = vld [vmem:[#allocation8 + $0x40] sm:$0xff]
    %v1690 = vld [vmem:[#allocation8 + $0x48] sm:$0xff]
    %v1691 = vld [vmem:[#allocation8 + $0x50] sm:$0xff]
    %v1692 = vld [vmem:[#allocation8 + $0x58] sm:$0xff]
    %v1693 = vld [vmem:[#allocation8 + $0x60] sm:$0xff]
    %v1694 = vld [vmem:[#allocation8 + $0x68] sm:$0xff]
    %v1695 = vld [vmem:[#allocation8 + $0x70] sm:$0xff]
    %v1696 = vld [vmem:[#allocation8 + $0x78] sm:$0xff]
    %v1697 = vld [vmem:[#allocation8 + $0x80] sm:$0xff]
    %v1698 = vld [vmem:[#allocation8 + $0x88] sm:$0xff]
    %v1699 = vld [vmem:[#allocation8 + $0x90] sm:$0xff]
    %v1700 = vld [vmem:[#allocation8 + $0x98] sm:$0xff]
    %v1701 = vld [vmem:[#allocation8 + $0xa0] sm:$0xff]
    %v1702 = vld [vmem:[#allocation8 + $0xa8] sm:$0xff]
    %v1703 = vld [vmem:[#allocation8 + $0xb0] sm:$0xff]
    %v1704 = vld [vmem:[#allocation8 + $0xb8] sm:$0xff]
    %v1705 = vld [vmem:[#allocation8 + $0xc0] sm:$0xff]
    %v1706 = vld [vmem:[#allocation8 + $0xc8] sm:$0xff]
    %v1707 = vld [vmem:[#allocation8 + $0xd0] sm:$0xff]
    %v1708 = vld [vmem:[#allocation8 + $0xd8] sm:$0xff]
    %v1709 = vld [vmem:[#allocation8 + $0xe0] sm:$0xff]
    %v1710 = vld [vmem:[#allocation8 + $0xe8] sm:$0xff]
    %v1711 = vld [vmem:[#allocation8 + $0xf0] sm:$0xff]
    %v1712 = vld [vmem:[#allocation8 + $0xf8] sm:$0xff]
    %v1713 = vld [vmem:[#allocation8 + $0x100] sm:$0xff]
    %v1714 = vld [vmem:[#allocation8 + $0x108] sm:$0xff]
    %v1715 = vld [vmem:[#allocation8 + $0x110] sm:$0xff]
    %v1716 = vld [vmem:[#allocation8 + $0x118] sm:$0xff]
    %v1717 = vld [vmem:[#allocation8 + $0x120] sm:$0xff]
    %v1718 = vld [vmem:[#allocation8 + $0x128] sm:$0xff]
    %v1719 = vld [vmem:[#allocation8 + $0x130] sm:$0xff]
    %v1720 = vld [vmem:[#allocation8 + $0x138] sm:$0xff]
    %v1721 = vld [vmem:[#allocation8 + $0x140] sm:$0xff]
    %v1722 = vld [vmem:[#allocation8 + $0x148] sm:$0xff]
    %v1723 = vld [vmem:[#allocation8 + $0x150] sm:$0xff]
    %v1724 = vld [vmem:[#allocation8 + $0x158] sm:$0xff]
    %v1725 = vld [vmem:[#allocation8 + $0x160] sm:$0xff]
    %v1726 = vld [vmem:[#allocation8 + $0x168] sm:$0xff]
    %v1727 = vld [vmem:[#allocation8 + $0x170] sm:$0xff]
    %v1728 = vld [vmem:[#allocation8 + $0x178] sm:$0xff]
    %v1729 = vld [vmem:[#allocation8 + $0x180] sm:$0xff]
    %v1730 = vld [vmem:[#allocation8 + $0x188] sm:$0xff]
    %v1731 = vld [vmem:[#allocation8 + $0x190] sm:$0xff]
    %v1732 = vld [vmem:[#allocation8 + $0x198] sm:$0xff]
    %v1733 = vld [vmem:[#allocation8 + $0x1a0] sm:$0xff]
    %v1734 = vld [vmem:[#allocation8 + $0x1a8] sm:$0xff]
    %v1735 = vld [vmem:[#allocation8 + $0x1b0] sm:$0xff]
    %v1736 = vld [vmem:[#allocation8 + $0x1b8] sm:$0xff]
    %v1737 = vld [vmem:[#allocation8 + $0x1c0] sm:$0xff]
    %v1738 = vld [vmem:[#allocation8 + $0x1c8] sm:$0xff]
    %v1739 = vld [vmem:[#allocation8 + $0x1d0] sm:$0xff]
    %v1740 = vld [vmem:[#allocation8 + $0x1d8] sm:$0xff]
    %v1741 = vld [vmem:[#allocation8 + $0x1e0] sm:$0xff]
    %v1742 = vld [vmem:[#allocation8 + $0x1e8] sm:$0xff]
    %v1743 = vld [vmem:[#allocation8 + $0x1f0] sm:$0xff]
    %v1744 = vld [vmem:[#allocation8 + $0x1f8] sm:$0xff]
    %v1745 = vld [vmem:[#allocation8 + $0x200] sm:$0xff]
    %v1746 = vld [vmem:[#allocation8 + $0x208] sm:$0xff]
    %v1747 = vld [vmem:[#allocation8 + $0x210] sm:$0xff]
    %v1748 = vld [vmem:[#allocation8 + $0x218] sm:$0xff]
    %v1749 = vld [vmem:[#allocation8 + $0x220] sm:$0xff]
    %v1750 = vld [vmem:[#allocation8 + $0x228] sm:$0xff]
    %v1751 = vld [vmem:[#allocation8 + $0x230] sm:$0xff]
    %v1752 = vld [vmem:[#allocation8 + $0x238] sm:$0xff]
    %v1753 = vld [vmem:[#allocation8 + $0x240] sm:$0xff]
    %v1754 = vld [vmem:[#allocation8 + $0x248] sm:$0xff]
    %v1755 = vld [vmem:[#allocation8 + $0x250] sm:$0xff]
    %v1756 = vld [vmem:[#allocation8 + $0x258] sm:$0xff]
    %v1757 = vld [vmem:[#allocation8 + $0x260] sm:$0xff]
    %v1758 = vld [vmem:[#allocation8 + $0x268] sm:$0xff]
    %v1759 = vld [vmem:[#allocation8 + $0x270] sm:$0xff]
    %v1760 = vld [vmem:[#allocation8 + $0x278] sm:$0xff]
    %v1761 = vld [vmem:[#allocation8 + $0x280] sm:$0xff]
    %v1762 = vld [vmem:[#allocation8 + $0x288] sm:$0xff]
    %v1763 = vld [vmem:[#allocation8 + $0x290] sm:$0xff]
    %v1764 = vld [vmem:[#allocation8 + $0x298] sm:$0xff]
    %v1765 = vld [vmem:[#allocation8 + $0x2a0] sm:$0xff]
    %v1766 = vld [vmem:[#allocation8 + $0x2a8] sm:$0xff]
    %v1767 = vld [vmem:[#allocation8 + $0x2b0] sm:$0xff]
    %v1768 = vld [vmem:[#allocation8 + $0x2b8] sm:$0xff]
    %v1769 = vld [vmem:[#allocation8 + $0x2c0] sm:$0xff]
    %v1770 = vld [vmem:[#allocation8 + $0x2c8] sm:$0xff]
    %v1771 = vld [vmem:[#allocation8 + $0x2d0] sm:$0xff]
    %v1772 = vld [vmem:[#allocation8 + $0x2d8] sm:$0xff]
    %v1773 = vld [vmem:[#allocation8 + $0x2e0] sm:$0xff]
    %v1774 = vld [vmem:[#allocation8 + $0x2e8] sm:$0xff]
    %v1775 = vld [vmem:[#allocation8 + $0x2f0] sm:$0xff]
    %v1776 = vld [vmem:[#allocation8 + $0x2f8] sm:$0xff]
    %v1777 = vld [vmem:[#allocation8 + $0x300] sm:$0xff]
    %v1778 = vld [vmem:[#allocation8 + $0x308] sm:$0xff]
    %v1779 = vld [vmem:[#allocation8 + $0x310] sm:$0xff]
    %v1780 = vld [vmem:[#allocation8 + $0x318] sm:$0xff]
    %v1781 = vld [vmem:[#allocation8 + $0x320] sm:$0xff]
    %v1782 = vld [vmem:[#allocation8 + $0x328] sm:$0xff]
    %v1783 = vld [vmem:[#allocation8 + $0x330] sm:$0xff]
    %v1784 = vld [vmem:[#allocation8 + $0x338] sm:$0xff]
    %v1785 = vld [vmem:[#allocation8 + $0x340] sm:$0xff]
    %v1786 = vld [vmem:[#allocation8 + $0x348] sm:$0xff]
    %v1787 = vld [vmem:[#allocation8 + $0x350] sm:$0xff]
    %v1788 = vld [vmem:[#allocation8 + $0x358] sm:$0xff]
    %v1789 = vld [vmem:[#allocation8 + $0x360] sm:$0xff]
    %v1790 = vld [vmem:[#allocation8 + $0x368] sm:$0xff]
    %v1791 = vld [vmem:[#allocation8 + $0x370] sm:$0xff]
    %v1792 = vld [vmem:[#allocation8 + $0x378] sm:$0xff]
    %v1793 = vld [vmem:[#allocation8 + $0x380] sm:$0xff]
    %v1794 = vld [vmem:[#allocation8 + $0x388] sm:$0xff]
    %v1795 = vld [vmem:[#allocation8 + $0x390] sm:$0xff]
    %v1796 = vld [vmem:[#allocation8 + $0x398] sm:$0xff]
    %v1797 = vld [vmem:[#allocation8 + $0x3a0] sm:$0xff]
    %v1798 = vld [vmem:[#allocation8 + $0x3a8] sm:$0xff]
    %v1799 = vld [vmem:[#allocation8 + $0x3b0] sm:$0xff]
    %v1800 = vld [vmem:[#allocation8 + $0x3b8] sm:$0xff]
    %v1801 = vld [vmem:[#allocation8 + $0x3c0] sm:$0xff]
    %v1802 = vld [vmem:[#allocation8 + $0x3c8] sm:$0xff]
    %v1803 = vld [vmem:[#allocation8 + $0x3d0] sm:$0xff]
    %v1804 = vld [vmem:[#allocation8 + $0x3d8] sm:$0xff]
    %v1805 = vld [vmem:[#allocation8 + $0x3e0] sm:$0xff]
    %v1806 = vld [vmem:[#allocation8 + $0x3e8] sm:$0xff]
    %v1807 = vld [vmem:[#allocation8 + $0x3f0] sm:$0xff]
    %v1808 = vld [vmem:[#allocation8 + $0x3f8] sm:$0xff]
    %v1809 = vld [vmem:[#allocation10] sm:$0xf]
    %v1811 = vlaneseq
    %v1812 = vshrl.u32 %v1811, 7
    %v1813 = vsub.s32 0, %v1812
    %v1814 = vrot.slane %v1809, %v1813
    %v1815 = vlaneseq
    %v1816 = vshrl.u32 %v1815, 7
    %v1817 = vsub.s32 1, %v1816
    %v1818 = vrot.slane %v1809, %v1817
    %v1819 = vlaneseq
    %v1820 = vshrl.u32 %v1819, 7
    %v1821 = vsub.s32 2, %v1820
    %v1822 = vrot.slane %v1809, %v1821
    %v1823 = vlaneseq
    %v1824 = vshrl.u32 %v1823, 7
    %v1825 = vsub.s32 3, %v1824
    %v1826 = vrot.slane %v1809, %v1825
    %v1959 = vunpack.c.l.b16 %v1681
    %v1960 = vunpack.c.h.b16 %v1681
    %v1961 = vunpack.c.l.b16 %v1682
    %v1962 = vunpack.c.h.b16 %v1682
    %v1963 = vunpack.c.l.b16 %v1683
    %v1964 = vunpack.c.h.b16 %v1683
    %v1965 = vunpack.c.l.b16 %v1684
    %v1966 = vunpack.c.h.b16 %v1684
    %v1967 = vunpack.c.l.b16 %v1685
    %v1968 = vunpack.c.h.b16 %v1685
    %v1969 = vunpack.c.l.b16 %v1686
    %v1970 = vunpack.c.h.b16 %v1686
    %v1971 = vunpack.c.l.b16 %v1687
    %v1972 = vunpack.c.h.b16 %v1687
    %v1973 = vunpack.c.l.b16 %v1688
    %v1974 = vunpack.c.h.b16 %v1688
    %v1975 = vunpack.c.l.b16 %v1689
    %v1976 = vunpack.c.h.b16 %v1689
    %v1977 = vunpack.c.l.b16 %v1690
    %v1978 = vunpack.c.h.b16 %v1690
    %v1979 = vunpack.c.l.b16 %v1691
    %v1980 = vunpack.c.h.b16 %v1691
    %v1981 = vunpack.c.l.b16 %v1692
    %v1982 = vunpack.c.h.b16 %v1692
    %v1983 = vunpack.c.l.b16 %v1693
    %v1984 = vunpack.c.h.b16 %v1693
    %v1985 = vunpack.c.l.b16 %v1694
    %v1986 = vunpack.c.h.b16 %v1694
    %v1987 = vunpack.c.l.b16 %v1695
    %v1988 = vunpack.c.h.b16 %v1695
    %v1989 = vunpack.c.l.b16 %v1696
    %v1990 = vunpack.c.h.b16 %v1696
    %v1991 = vunpack.c.l.b16 %v1697
    %v1992 = vunpack.c.h.b16 %v1697
    %v1993 = vunpack.c.l.b16 %v1698
    %v1994 = vunpack.c.h.b16 %v1698
    %v1995 = vunpack.c.l.b16 %v1699
    %v1996 = vunpack.c.h.b16 %v1699
    %v1997 = vunpack.c.l.b16 %v1700
    %v1998 = vunpack.c.h.b16 %v1700
    %v1999 = vunpack.c.l.b16 %v1701
    %v2000 = vunpack.c.h.b16 %v1701
    %v2001 = vunpack.c.l.b16 %v1702
    %v2002 = vunpack.c.h.b16 %v1702
    %v2003 = vunpack.c.l.b16 %v1703
    %v2004 = vunpack.c.h.b16 %v1703
    %v2005 = vunpack.c.l.b16 %v1704
    %v2006 = vunpack.c.h.b16 %v1704
    %v2007 = vunpack.c.l.b16 %v1705
    %v2008 = vunpack.c.h.b16 %v1705
    %v2009 = vunpack.c.l.b16 %v1706
    %v2010 = vunpack.c.h.b16 %v1706
    %v2011 = vunpack.c.l.b16 %v1707
    %v2012 = vunpack.c.h.b16 %v1707
    %v2013 = vunpack.c.l.b16 %v1708
    %v2014 = vunpack.c.h.b16 %v1708
    %v2015 = vunpack.c.l.b16 %v1709
    %v2016 = vunpack.c.h.b16 %v1709
    %v2017 = vunpack.c.l.b16 %v1710
    %v2018 = vunpack.c.h.b16 %v1710
    %v2019 = vunpack.c.l.b16 %v1711
    %v2020 = vunpack.c.h.b16 %v1711
    %v2021 = vunpack.c.l.b16 %v1712
    %v2022 = vunpack.c.h.b16 %v1712
    %v2023 = vunpack.c.l.b16 %v1713
    %v2024 = vunpack.c.h.b16 %v1713
    %v2025 = vunpack.c.l.b16 %v1714
    %v2026 = vunpack.c.h.b16 %v1714
    %v2027 = vunpack.c.l.b16 %v1715
    %v2028 = vunpack.c.h.b16 %v1715
    %v2029 = vunpack.c.l.b16 %v1716
    %v2030 = vunpack.c.h.b16 %v1716
    %v2031 = vunpack.c.l.b16 %v1717
    %v2032 = vunpack.c.h.b16 %v1717
    %v2033 = vunpack.c.l.b16 %v1718
    %v2034 = vunpack.c.h.b16 %v1718
    %v2035 = vunpack.c.l.b16 %v1719
    %v2036 = vunpack.c.h.b16 %v1719
    %v2037 = vunpack.c.l.b16 %v1720
    %v2038 = vunpack.c.h.b16 %v1720
    %v2039 = vunpack.c.l.b16 %v1721
    %v2040 = vunpack.c.h.b16 %v1721
    %v2041 = vunpack.c.l.b16 %v1722
    %v2042 = vunpack.c.h.b16 %v1722
    %v2043 = vunpack.c.l.b16 %v1723
    %v2044 = vunpack.c.h.b16 %v1723
    %v2045 = vunpack.c.l.b16 %v1724
    %v2046 = vunpack.c.h.b16 %v1724
    %v2047 = vunpack.c.l.b16 %v1725
    %v2048 = vunpack.c.h.b16 %v1725
    %v2049 = vunpack.c.l.b16 %v1726
    %v2050 = vunpack.c.h.b16 %v1726
    %v2051 = vunpack.c.l.b16 %v1727
    %v2052 = vunpack.c.h.b16 %v1727
    %v2053 = vunpack.c.l.b16 %v1728
    %v2054 = vunpack.c.h.b16 %v1728
    %v2055 = vunpack.c.l.b16 %v1729
    %v2056 = vunpack.c.h.b16 %v1729
    %v2057 = vunpack.c.l.b16 %v1730
    %v2058 = vunpack.c.h.b16 %v1730
    %v2059 = vunpack.c.l.b16 %v1731
    %v2060 = vunpack.c.h.b16 %v1731
    %v2061 = vunpack.c.l.b16 %v1732
    %v2062 = vunpack.c.h.b16 %v1732
    %v2063 = vunpack.c.l.b16 %v1733
    %v2064 = vunpack.c.h.b16 %v1733
    %v2065 = vunpack.c.l.b16 %v1734
    %v2066 = vunpack.c.h.b16 %v1734
    %v2067 = vunpack.c.l.b16 %v1735
    %v2068 = vunpack.c.h.b16 %v1735
    %v2069 = vunpack.c.l.b16 %v1736
    %v2070 = vunpack.c.h.b16 %v1736
    %v2071 = vunpack.c.l.b16 %v1737
    %v2072 = vunpack.c.h.b16 %v1737
    %v2073 = vunpack.c.l.b16 %v1738
    %v2074 = vunpack.c.h.b16 %v1738
    %v2075 = vunpack.c.l.b16 %v1739
    %v2076 = vunpack.c.h.b16 %v1739
    %v2077 = vunpack.c.l.b16 %v1740
    %v2078 = vunpack.c.h.b16 %v1740
    %v2079 = vunpack.c.l.b16 %v1741
    %v2080 = vunpack.c.h.b16 %v1741
    %v2081 = vunpack.c.l.b16 %v1742
    %v2082 = vunpack.c.h.b16 %v1742
    %v2083 = vunpack.c.l.b16 %v1743
    %v2084 = vunpack.c.h.b16 %v1743
    %v2085 = vunpack.c.l.b16 %v1744
    %v2086 = vunpack.c.h.b16 %v1744
    %v2087 = vunpack.c.l.b16 %v1745
    %v2088 = vunpack.c.h.b16 %v1745
    %v2089 = vunpack.c.l.b16 %v1746
    %v2090 = vunpack.c.h.b16 %v1746
    %v2091 = vunpack.c.l.b16 %v1747
    %v2092 = vunpack.c.h.b16 %v1747
    %v2093 = vunpack.c.l.b16 %v1748
    %v2094 = vunpack.c.h.b16 %v1748
    %v2095 = vunpack.c.l.b16 %v1749
    %v2096 = vunpack.c.h.b16 %v1749
    %v2097 = vunpack.c.l.b16 %v1750
    %v2098 = vunpack.c.h.b16 %v1750
    %v2099 = vunpack.c.l.b16 %v1751
    %v2100 = vunpack.c.h.b16 %v1751
    %v2101 = vunpack.c.l.b16 %v1752
    %v2102 = vunpack.c.h.b16 %v1752
    %v2103 = vunpack.c.l.b16 %v1753
    %v2104 = vunpack.c.h.b16 %v1753
    %v2105 = vunpack.c.l.b16 %v1754
    %v2106 = vunpack.c.h.b16 %v1754
    %v2107 = vunpack.c.l.b16 %v1755
    %v2108 = vunpack.c.h.b16 %v1755
    %v2109 = vunpack.c.l.b16 %v1756
    %v2110 = vunpack.c.h.b16 %v1756
    %v2111 = vunpack.c.l.b16 %v1757
    %v2112 = vunpack.c.h.b16 %v1757
    %v2113 = vunpack.c.l.b16 %v1758
    %v2114 = vunpack.c.h.b16 %v1758
    %v2115 = vunpack.c.l.b16 %v1759
    %v2116 = vunpack.c.h.b16 %v1759
    %v2117 = vunpack.c.l.b16 %v1760
    %v2118 = vunpack.c.h.b16 %v1760
    %v2119 = vunpack.c.l.b16 %v1761
    %v2120 = vunpack.c.h.b16 %v1761
    %v2121 = vunpack.c.l.b16 %v1762
    %v2122 = vunpack.c.h.b16 %v1762
    %v2123 = vunpack.c.l.b16 %v1763
    %v2124 = vunpack.c.h.b16 %v1763
    %v2125 = vunpack.c.l.b16 %v1764
    %v2126 = vunpack.c.h.b16 %v1764
    %v2127 = vunpack.c.l.b16 %v1765
    %v2128 = vunpack.c.h.b16 %v1765
    %v2129 = vunpack.c.l.b16 %v1766
    %v2130 = vunpack.c.h.b16 %v1766
    %v2131 = vunpack.c.l.b16 %v1767
    %v2132 = vunpack.c.h.b16 %v1767
    %v2133 = vunpack.c.l.b16 %v1768
    %v2134 = vunpack.c.h.b16 %v1768
    %v2135 = vunpack.c.l.b16 %v1769
    %v2136 = vunpack.c.h.b16 %v1769
    %v2137 = vunpack.c.l.b16 %v1770
    %v2138 = vunpack.c.h.b16 %v1770
    %v2139 = vunpack.c.l.b16 %v1771
    %v2140 = vunpack.c.h.b16 %v1771
    %v2141 = vunpack.c.l.b16 %v1772
    %v2142 = vunpack.c.h.b16 %v1772
    %v2143 = vunpack.c.l.b16 %v1773
    %v2144 = vunpack.c.h.b16 %v1773
    %v2145 = vunpack.c.l.b16 %v1774
    %v2146 = vunpack.c.h.b16 %v1774
    %v2147 = vunpack.c.l.b16 %v1775
    %v2148 = vunpack.c.h.b16 %v1775
    %v2149 = vunpack.c.l.b16 %v1776
    %v2150 = vunpack.c.h.b16 %v1776
    %v2151 = vunpack.c.l.b16 %v1777
    %v2152 = vunpack.c.h.b16 %v1777
    %v2153 = vunpack.c.l.b16 %v1778
    %v2154 = vunpack.c.h.b16 %v1778
    %v2155 = vunpack.c.l.b16 %v1779
    %v2156 = vunpack.c.h.b16 %v1779
    %v2157 = vunpack.c.l.b16 %v1780
    %v2158 = vunpack.c.h.b16 %v1780
    %v2159 = vunpack.c.l.b16 %v1781
    %v2160 = vunpack.c.h.b16 %v1781
    %v2161 = vunpack.c.l.b16 %v1782
    %v2162 = vunpack.c.h.b16 %v1782
    %v2163 = vunpack.c.l.b16 %v1783
    %v2164 = vunpack.c.h.b16 %v1783
    %v2165 = vunpack.c.l.b16 %v1784
    %v2166 = vunpack.c.h.b16 %v1784
    %v2167 = vunpack.c.l.b16 %v1785
    %v2168 = vunpack.c.h.b16 %v1785
    %v2169 = vunpack.c.l.b16 %v1786
    %v2170 = vunpack.c.h.b16 %v1786
    %v2171 = vunpack.c.l.b16 %v1787
    %v2172 = vunpack.c.h.b16 %v1787
    %v2173 = vunpack.c.l.b16 %v1788
    %v2174 = vunpack.c.h.b16 %v1788
    %v2175 = vunpack.c.l.b16 %v1789
    %v2176 = vunpack.c.h.b16 %v1789
    %v2177 = vunpack.c.l.b16 %v1790
    %v2178 = vunpack.c.h.b16 %v1790
    %v2179 = vunpack.c.l.b16 %v1791
    %v2180 = vunpack.c.h.b16 %v1791
    %v2181 = vunpack.c.l.b16 %v1792
    %v2182 = vunpack.c.h.b16 %v1792
    %v2183 = vunpack.c.l.b16 %v1793
    %v2184 = vunpack.c.h.b16 %v1793
    %v2185 = vunpack.c.l.b16 %v1794
    %v2186 = vunpack.c.h.b16 %v1794
    %v2187 = vunpack.c.l.b16 %v1795
    %v2188 = vunpack.c.h.b16 %v1795
    %v2189 = vunpack.c.l.b16 %v1796
    %v2190 = vunpack.c.h.b16 %v1796
    %v2191 = vunpack.c.l.b16 %v1797
    %v2192 = vunpack.c.h.b16 %v1797
    %v2193 = vunpack.c.l.b16 %v1798
    %v2194 = vunpack.c.h.b16 %v1798
    %v2195 = vunpack.c.l.b16 %v1799
    %v2196 = vunpack.c.h.b16 %v1799
    %v2197 = vunpack.c.l.b16 %v1800
    %v2198 = vunpack.c.h.b16 %v1800
    %v2199 = vunpack.c.l.b16 %v1801
    %v2200 = vunpack.c.h.b16 %v1801
    %v2201 = vunpack.c.l.b16 %v1802
    %v2202 = vunpack.c.h.b16 %v1802
    %v2203 = vunpack.c.l.b16 %v1803
    %v2204 = vunpack.c.h.b16 %v1803
    %v2205 = vunpack.c.l.b16 %v1804
    %v2206 = vunpack.c.h.b16 %v1804
    %v2207 = vunpack.c.l.b16 %v1805
    %v2208 = vunpack.c.h.b16 %v1805
    %v2209 = vunpack.c.l.b16 %v1806
    %v2210 = vunpack.c.h.b16 %v1806
    %v2211 = vunpack.c.l.b16 %v1807
    %v2212 = vunpack.c.h.b16 %v1807
    %v2213 = vunpack.c.l.b16 %v1808
    %v2214 = vunpack.c.h.b16 %v1808
    %v2215 = vpack.c.b16 %v1963, %v1959
    %v2216 = vpack.c.b16 %v1964, %v1960
    %v2217 = vpack.c.b16 %v1965, %v1961
    %v2218 = vpack.c.b16 %v1966, %v1962
    %v2219 = vpack.c.b16 %v1971, %v1967
    %v2220 = vpack.c.b16 %v1972, %v1968
    %v2221 = vpack.c.b16 %v1973, %v1969
    %v2222 = vpack.c.b16 %v1974, %v1970
    %v2223 = vpack.c.b16 %v1979, %v1975
    %v2224 = vpack.c.b16 %v1980, %v1976
    %v2225 = vpack.c.b16 %v1981, %v1977
    %v2226 = vpack.c.b16 %v1982, %v1978
    %v2227 = vpack.c.b16 %v1987, %v1983
    %v2228 = vpack.c.b16 %v1988, %v1984
    %v2229 = vpack.c.b16 %v1989, %v1985
    %v2230 = vpack.c.b16 %v1990, %v1986
    %v2231 = vpack.c.b16 %v1995, %v1991
    %v2232 = vpack.c.b16 %v1996, %v1992
    %v2233 = vpack.c.b16 %v1997, %v1993
    %v2234 = vpack.c.b16 %v1998, %v1994
    %v2235 = vpack.c.b16 %v2003, %v1999
    %v2236 = vpack.c.b16 %v2004, %v2000
    %v2237 = vpack.c.b16 %v2005, %v2001
    %v2238 = vpack.c.b16 %v2006, %v2002
    %v2239 = vpack.c.b16 %v2011, %v2007
    %v2240 = vpack.c.b16 %v2012, %v2008
    %v2241 = vpack.c.b16 %v2013, %v2009
    %v2242 = vpack.c.b16 %v2014, %v2010
    %v2243 = vpack.c.b16 %v2019, %v2015
    %v2244 = vpack.c.b16 %v2020, %v2016
    %v2245 = vpack.c.b16 %v2021, %v2017
    %v2246 = vpack.c.b16 %v2022, %v2018
    %v2247 = vpack.c.b16 %v2027, %v2023
    %v2248 = vpack.c.b16 %v2028, %v2024
    %v2249 = vpack.c.b16 %v2029, %v2025
    %v2250 = vpack.c.b16 %v2030, %v2026
    %v2251 = vpack.c.b16 %v2035, %v2031
    %v2252 = vpack.c.b16 %v2036, %v2032
    %v2253 = vpack.c.b16 %v2037, %v2033
    %v2254 = vpack.c.b16 %v2038, %v2034
    %v2255 = vpack.c.b16 %v2043, %v2039
    %v2256 = vpack.c.b16 %v2044, %v2040
    %v2257 = vpack.c.b16 %v2045, %v2041
    %v2258 = vpack.c.b16 %v2046, %v2042
    %v2259 = vpack.c.b16 %v2051, %v2047
    %v2260 = vpack.c.b16 %v2052, %v2048
    %v2261 = vpack.c.b16 %v2053, %v2049
    %v2262 = vpack.c.b16 %v2054, %v2050
    %v2263 = vpack.c.b16 %v2059, %v2055
    %v2264 = vpack.c.b16 %v2060, %v2056
    %v2265 = vpack.c.b16 %v2061, %v2057
    %v2266 = vpack.c.b16 %v2062, %v2058
    %v2267 = vpack.c.b16 %v2067, %v2063
    %v2268 = vpack.c.b16 %v2068, %v2064
    %v2269 = vpack.c.b16 %v2069, %v2065
    %v2270 = vpack.c.b16 %v2070, %v2066
    %v2271 = vpack.c.b16 %v2075, %v2071
    %v2272 = vpack.c.b16 %v2076, %v2072
    %v2273 = vpack.c.b16 %v2077, %v2073
    %v2274 = vpack.c.b16 %v2078, %v2074
    %v2275 = vpack.c.b16 %v2083, %v2079
    %v2276 = vpack.c.b16 %v2084, %v2080
    %v2277 = vpack.c.b16 %v2085, %v2081
    %v2278 = vpack.c.b16 %v2086, %v2082
    %v2279 = vpack.c.b16 %v2091, %v2087
    %v2280 = vpack.c.b16 %v2092, %v2088
    %v2281 = vpack.c.b16 %v2093, %v2089
    %v2282 = vpack.c.b16 %v2094, %v2090
    %v2283 = vpack.c.b16 %v2099, %v2095
    %v2284 = vpack.c.b16 %v2100, %v2096
    %v2285 = vpack.c.b16 %v2101, %v2097
    %v2286 = vpack.c.b16 %v2102, %v2098
    %v2287 = vpack.c.b16 %v2107, %v2103
    %v2288 = vpack.c.b16 %v2108, %v2104
    %v2289 = vpack.c.b16 %v2109, %v2105
    %v2290 = vpack.c.b16 %v2110, %v2106
    %v2291 = vpack.c.b16 %v2115, %v2111
    %v2292 = vpack.c.b16 %v2116, %v2112
    %v2293 = vpack.c.b16 %v2117, %v2113
    %v2294 = vpack.c.b16 %v2118, %v2114
    %v2295 = vpack.c.b16 %v2123, %v2119
    %v2296 = vpack.c.b16 %v2124, %v2120
    %v2297 = vpack.c.b16 %v2125, %v2121
    %v2298 = vpack.c.b16 %v2126, %v2122
    %v2299 = vpack.c.b16 %v2131, %v2127
    %v2300 = vpack.c.b16 %v2132, %v2128
    %v2301 = vpack.c.b16 %v2133, %v2129
    %v2302 = vpack.c.b16 %v2134, %v2130
    %v2303 = vpack.c.b16 %v2139, %v2135
    %v2304 = vpack.c.b16 %v2140, %v2136
    %v2305 = vpack.c.b16 %v2141, %v2137
    %v2306 = vpack.c.b16 %v2142, %v2138
    %v2307 = vpack.c.b16 %v2147, %v2143
    %v2308 = vpack.c.b16 %v2148, %v2144
    %v2309 = vpack.c.b16 %v2149, %v2145
    %v2310 = vpack.c.b16 %v2150, %v2146
    %v2311 = vpack.c.b16 %v2155, %v2151
    %v2312 = vpack.c.b16 %v2156, %v2152
    %v2313 = vpack.c.b16 %v2157, %v2153
    %v2314 = vpack.c.b16 %v2158, %v2154
    %v2315 = vpack.c.b16 %v2163, %v2159
    %v2316 = vpack.c.b16 %v2164, %v2160
    %v2317 = vpack.c.b16 %v2165, %v2161
    %v2318 = vpack.c.b16 %v2166, %v2162
    %v2319 = vpack.c.b16 %v2171, %v2167
    %v2320 = vpack.c.b16 %v2172, %v2168
    %v2321 = vpack.c.b16 %v2173, %v2169
    %v2322 = vpack.c.b16 %v2174, %v2170
    %v2323 = vpack.c.b16 %v2179, %v2175
    %v2324 = vpack.c.b16 %v2180, %v2176
    %v2325 = vpack.c.b16 %v2181, %v2177
    %v2326 = vpack.c.b16 %v2182, %v2178
    %v2327 = vpack.c.b16 %v2187, %v2183
    %v2328 = vpack.c.b16 %v2188, %v2184
    %v2329 = vpack.c.b16 %v2189, %v2185
    %v2330 = vpack.c.b16 %v2190, %v2186
    %v2331 = vpack.c.b16 %v2195, %v2191
    %v2332 = vpack.c.b16 %v2196, %v2192
    %v2333 = vpack.c.b16 %v2197, %v2193
    %v2334 = vpack.c.b16 %v2198, %v2194
    %v2335 = vpack.c.b16 %v2203, %v2199
    %v2336 = vpack.c.b16 %v2204, %v2200
    %v2337 = vpack.c.b16 %v2205, %v2201
    %v2338 = vpack.c.b16 %v2206, %v2202
    %v2339 = vpack.c.b16 %v2211, %v2207
    %v2340 = vpack.c.b16 %v2212, %v2208
    %v2341 = vpack.c.b16 %v2213, %v2209
    %v2342 = vpack.c.b16 %v2214, %v2210
    %2471 = vmatprep.subr.bf16.mxu0 %v2216
    %2472 = vmatpush1.bf16.msra.mxu0 %v2215
    %2473 = vmatprep.subr.bf16.mxu0 %v2220
    %2474 = vmatpush1.bf16.msra.mxu0 %v2219
    %2475 = vmatprep.subr.bf16.mxu0 %v2224
    %2476 = vmatpush1.bf16.msra.mxu0 %v2223
    %2477 = vmatprep.subr.bf16.mxu0 %v2228
    %2478 = vmatpush1.bf16.msra.mxu0 %v2227
    %2479 = vmatprep.subr.bf16.mxu0 %v2232
    %2480 = vmatpush1.bf16.msra.mxu0 %v2231
    %2481 = vmatprep.subr.bf16.mxu0 %v2236
    %2482 = vmatpush1.bf16.msra.mxu0 %v2235
    %2483 = vmatprep.subr.bf16.mxu0 %v2240
    %2484 = vmatpush1.bf16.msra.mxu0 %v2239
    %2485 = vmatprep.subr.bf16.mxu0 %v2244
    %2486 = vmatpush1.bf16.msra.mxu0 %v2243
    %2487 = vmatprep.subr.bf16.mxu0 %v2248
    %2488 = vmatpush1.bf16.msra.mxu0 %v2247
    %2489 = vmatprep.subr.bf16.mxu0 %v2252
    %2490 = vmatpush1.bf16.msra.mxu0 %v2251
    %2491 = vmatprep.subr.bf16.mxu0 %v2256
    %2492 = vmatpush1.bf16.msra.mxu0 %v2255
    %2493 = vmatprep.subr.bf16.mxu0 %v2260
    %2494 = vmatpush1.bf16.msra.mxu0 %v2259
    %2495 = vmatprep.subr.bf16.mxu0 %v2264
    %2496 = vmatpush1.bf16.msra.mxu0 %v2263
    %2497 = vmatprep.subr.bf16.mxu0 %v2268
    %2498 = vmatpush1.bf16.msra.mxu0 %v2267
    %2499 = vmatprep.subr.bf16.mxu0 %v2272
    %2500 = vmatpush1.bf16.msra.mxu0 %v2271
    %2501 = vmatprep.subr.bf16.mxu0 %v2276
    %2502 = vmatpush1.bf16.msra.mxu0 %v2275
    %2503 = vmatprep.mubr.bf16.mxu0 %v1678
    %2504 = vmatmul.mubr.bf16.gmra.mrb[0].mxu0 %v1677
    %v2505 = vpop.f32.mrb[0].mxu0
    %v2506 = vadd.f32 %v1814, %v2505
    %v2507 = vpop.f32.mrb[0].mxu0
    %v2508 = vadd.f32 %v1818, %v2507
    %v2509 = vpop.f32.mrb[0].mxu0
    %v2510 = vpop.f32.mrb[0].mxu0
    %2511 = vdwg.mxu0
    %2512 = vmatprep.subr.bf16.mxu0 %v2280
    %2513 = vmatpush1.bf16.msra.mxu0 %v2279
    %2514 = vmatprep.subr.bf16.mxu0 %v2284
    %2515 = vmatpush1.bf16.msra.mxu0 %v2283
    %2516 = vmatprep.subr.bf16.mxu0 %v2288
    %2517 = vmatpush1.bf16.msra.mxu0 %v2287
    %2518 = vmatprep.subr.bf16.mxu0 %v2292
    %2519 = vmatpush1.bf16.msra.mxu0 %v2291
    %2520 = vmatprep.subr.bf16.mxu0 %v2296
    %2521 = vmatpush1.bf16.msra.mxu0 %v2295
    %2522 = vmatprep.subr.bf16.mxu0 %v2300
    %2523 = vmatpush1.bf16.msra.mxu0 %v2299
    %2524 = vmatprep.subr.bf16.mxu0 %v2304
    %2525 = vmatpush1.bf16.msra.mxu0 %v2303
    %2526 = vmatprep.subr.bf16.mxu0 %v2308
    %2527 = vmatpush1.bf16.msra.mxu0 %v2307
    %2528 = vmatprep.subr.bf16.mxu0 %v2312
    %2529 = vmatpush1.bf16.msra.mxu0 %v2311
    %2530 = vmatprep.subr.bf16.mxu0 %v2316
    %2531 = vmatpush1.bf16.msra.mxu0 %v2315
    %2532 = vmatprep.subr.bf16.mxu0 %v2320
    %2533 = vmatpush1.bf16.msra.mxu0 %v2319
    %2534 = vmatprep.subr.bf16.mxu0 %v2324
    %2535 = vmatpush1.bf16.msra.mxu0 %v2323
    %2536 = vmatprep.subr.bf16.mxu0 %v2328
    %2537 = vmatpush1.bf16.msra.mxu0 %v2327
    %2538 = vmatprep.subr.bf16.mxu0 %v2332
    %2539 = vmatpush1.bf16.msra.mxu0 %v2331
    %2540 = vmatprep.subr.bf16.mxu0 %v2336
    %2541 = vmatpush1.bf16.msra.mxu0 %v2335
    %2542 = vmatprep.subr.bf16.mxu0 %v2340
    %2543 = vmatpush1.bf16.msra.mxu0 %v2339
    %2544 = vmatprep.mubr.bf16.mxu0 %v1680
    %2545 = vmatmul.mubr.bf16.gmra.mrb[0].mxu0 %v1679
    %v2546 = vpop.f32.mrb[0].mxu0
    %v2547 = vadd.f32 %v2506, %v2546
    %v2548 = vpop.f32.mrb[0].mxu0
    %v2549 = vadd.f32 %v2508, %v2548
    %v2550 = vpop.f32.mrb[0].mxu0
    %v2551 = vpop.f32.mrb[0].mxu0
    %2552 = vdwg.mxu0
    %2553 = vmatprep.subr.bf16.mxu0 %v2218
    %2554 = vmatpush1.bf16.msra.mxu0 %v2217
    %2555 = vmatprep.subr.bf16.mxu0 %v2222
    %2556 = vmatpush1.bf16.msra.mxu0 %v2221
    %2557 = vmatprep.subr.bf16.mxu0 %v2226
    %2558 = vmatpush1.bf16.msra.mxu0 %v2225
    %2559 = vmatprep.subr.bf16.mxu0 %v2230
    %2560 = vmatpush1.bf16.msra.mxu0 %v2229
    %2561 = vmatprep.subr.bf16.mxu0 %v2234
    %2562 = vmatpush1.bf16.msra.mxu0 %v2233
    %2563 = vmatprep.subr.bf16.mxu0 %v2238
    %2564 = vmatpush1.bf16.msra.mxu0 %v2237
    %2565 = vmatprep.subr.bf16.mxu0 %v2242
    %2566 = vmatpush1.bf16.msra.mxu0 %v2241
    %2567 = vmatprep.subr.bf16.mxu0 %v2246
    %2568 = vmatpush1.bf16.msra.mxu0 %v2245
    %2569 = vmatprep.subr.bf16.mxu0 %v2250
    %2570 = vmatpush1.bf16.msra.mxu0 %v2249
    %2571 = vmatprep.subr.bf16.mxu0 %v2254
    %2572 = vmatpush1.bf16.msra.mxu0 %v2253
    %2573 = vmatprep.subr.bf16.mxu0 %v2258
    %2574 = vmatpush1.bf16.msra.mxu0 %v2257
    %2575 = vmatprep.subr.bf16.mxu0 %v2262
    %2576 = vmatpush1.bf16.msra.mxu0 %v2261
    %2577 = vmatprep.subr.bf16.mxu0 %v2266
    %2578 = vmatpush1.bf16.msra.mxu0 %v2265
    %2579 = vmatprep.subr.bf16.mxu0 %v2270
    %2580 = vmatpush1.bf16.msra.mxu0 %v2269
    %2581 = vmatprep.subr.bf16.mxu0 %v2274
    %2582 = vmatpush1.bf16.msra.mxu0 %v2273
    %2583 = vmatprep.subr.bf16.mxu0 %v2278
    %2584 = vmatpush1.bf16.msra.mxu0 %v2277
    %2585 = vmatprep.mubr.bf16.mxu0 %v1678
    %2586 = vmatmul.mubr.bf16.gmra.mrb[0].mxu0 %v1677
    %v2587 = vpop.f32.mrb[0].mxu0
    %v2588 = vadd.f32 %v1822, %v2587
    %v2589 = vpop.f32.mrb[0].mxu0
    %v2590 = vadd.f32 %v1826, %v2589
    %v2591 = vpop.f32.mrb[0].mxu0
    %v2592 = vpop.f32.mrb[0].mxu0
    %2593 = vdwg.mxu0
    %2594 = vmatprep.subr.bf16.mxu0 %v2282
    %2595 = vmatpush1.bf16.msra.mxu0 %v2281
    %2596 = vmatprep.subr.bf16.mxu0 %v2286
    %2597 = vmatpush1.bf16.msra.mxu0 %v2285
    %2598 = vmatprep.subr.bf16.mxu0 %v2290
    %2599 = vmatpush1.bf16.msra.mxu0 %v2289
    %2600 = vmatprep.subr.bf16.mxu0 %v2294
    %2601 = vmatpush1.bf16.msra.mxu0 %v2293
    %2602 = vmatprep.subr.bf16.mxu0 %v2298
    %2603 = vmatpush1.bf16.msra.mxu0 %v2297
    %2604 = vmatprep.subr.bf16.mxu0 %v2302
    %2605 = vmatpush1.bf16.msra.mxu0 %v2301
    %2606 = vmatprep.subr.bf16.mxu0 %v2306
    %2607 = vmatpush1.bf16.msra.mxu0 %v2305
    %2608 = vmatprep.subr.bf16.mxu0 %v2310
    %2609 = vmatpush1.bf16.msra.mxu0 %v2309
    %2610 = vmatprep.subr.bf16.mxu0 %v2314
    %2611 = vmatpush1.bf16.msra.mxu0 %v2313
    %2612 = vmatprep.subr.bf16.mxu0 %v2318
    %2613 = vmatpush1.bf16.msra.mxu0 %v2317
    %2614 = vmatprep.subr.bf16.mxu0 %v2322
    %2615 = vmatpush1.bf16.msra.mxu0 %v2321
    %2616 = vmatprep.subr.bf16.mxu0 %v2326
    %2617 = vmatpush1.bf16.msra.mxu0 %v2325
    %2618 = vmatprep.subr.bf16.mxu0 %v2330
    %2619 = vmatpush1.bf16.msra.mxu0 %v2329
    %2620 = vmatprep.subr.bf16.mxu0 %v2334
    %2621 = vmatpush1.bf16.msra.mxu0 %v2333
    %2622 = vmatprep.subr.bf16.mxu0 %v2338
    %2623 = vmatpush1.bf16.msra.mxu0 %v2337
    %2624 = vmatprep.subr.bf16.mxu0 %v2342
    %2625 = vmatpush1.bf16.msra.mxu0 %v2341
    %2626 = vmatprep.mubr.bf16.mxu0 %v1680
    %2627 = vmatmul.mubr.bf16.gmra.mrb[0].mxu0 %v1679
    %v2628 = vpop.f32.mrb[0].mxu0
    %v2629 = vadd.f32 %v2588, %v2628
    %v2630 = vpop.f32.mrb[0].mxu0
    %v2631 = vadd.f32 %v2590, %v2630
    %v2632 = vpop.f32.mrb[0].mxu0
    %v2633 = vpop.f32.mrb[0].mxu0
    %2634 = vdwg.mxu0
    %v2635 = vmax.f32 %v2547, 0.0
    %v2636 = vmax.f32 %v2549, 0.0
    %v2637 = vmax.f32 %v2629, 0.0
    %v2638 = vmax.f32 %v2631, 0.0
    %v2639 = vpack.c.bf16 %v2635, %v2635
    %v2640 = vpack.c.bf16 %v2636, %v2636
    %v2641 = vpack.c.bf16 %v2637, %v2637
    %v2642 = vpack.c.bf16 %v2638, %v2638
    %v2643 = vld [vmem:[#allocation11] sm:$0xf]
    %v2644 = vld [vmem:[#allocation11 + $0x4] sm:$0xf]
    %v2645 = vld [vmem:[#allocation11 + $0x8] sm:$0xf]
    %v2646 = vld [vmem:[#allocation11 + $0xc] sm:$0xf]
    %v2647 = vld [vmem:[#allocation11 + $0x10] sm:$0xf]
    %v2648 = vld [vmem:[#allocation11 + $0x14] sm:$0xf]
    %v2649 = vld [vmem:[#allocation11 + $0x18] sm:$0xf]
    %v2650 = vld [vmem:[#allocation11 + $0x1c] sm:$0xf]
    %v2651 = vld [vmem:[#allocation11 + $0x20] sm:$0xf]
    %v2652 = vld [vmem:[#allocation11 + $0x24] sm:$0xf]
    %v2653 = vld [vmem:[#allocation11 + $0x28] sm:$0xf]
    %v2654 = vld [vmem:[#allocation11 + $0x2c] sm:$0xf]
    %v2655 = vld [vmem:[#allocation11 + $0x30] sm:$0xf]
    %v2656 = vld [vmem:[#allocation11 + $0x34] sm:$0xf]
    %v2657 = vld [vmem:[#allocation11 + $0x38] sm:$0xf]
    %v2658 = vld [vmem:[#allocation11 + $0x3c] sm:$0xf]
    %v2659 = vld [vmem:[#allocation11 + $0x40] sm:$0xf]
    %v2660 = vld [vmem:[#allocation11 + $0x44] sm:$0xf]
    %v2661 = vld [vmem:[#allocation11 + $0x48] sm:$0xf]
    %v2662 = vld [vmem:[#allocation11 + $0x4c] sm:$0xf]
    %v2663 = vld [vmem:[#allocation11 + $0x50] sm:$0xf]
    %v2664 = vld [vmem:[#allocation11 + $0x54] sm:$0xf]
    %v2665 = vld [vmem:[#allocation11 + $0x58] sm:$0xf]
    %v2666 = vld [vmem:[#allocation11 + $0x5c] sm:$0xf]
    %v2667 = vld [vmem:[#allocation11 + $0x60] sm:$0xf]
    %v2668 = vld [vmem:[#allocation11 + $0x64] sm:$0xf]
    %v2669 = vld [vmem:[#allocation11 + $0x68] sm:$0xf]
    %v2670 = vld [vmem:[#allocation11 + $0x6c] sm:$0xf]
    %v2671 = vld [vmem:[#allocation11 + $0x70] sm:$0xf]
    %v2672 = vld [vmem:[#allocation11 + $0x74] sm:$0xf]
    %v2673 = vld [vmem:[#allocation11 + $0x78] sm:$0xf]
    %v2674 = vld [vmem:[#allocation11 + $0x7c] sm:$0xf]
    %v2675 = vld [vmem:[#allocation11 + $0x80] sm:$0xf]
    %v2676 = vld [vmem:[#allocation11 + $0x84] sm:$0xf]
    %v2677 = vld [vmem:[#allocation11 + $0x88] sm:$0xf]
    %v2678 = vld [vmem:[#allocation11 + $0x8c] sm:$0xf]
    %v2679 = vld [vmem:[#allocation11 + $0x90] sm:$0xf]
    %v2680 = vld [vmem:[#allocation11 + $0x94] sm:$0xf]
    %v2681 = vld [vmem:[#allocation11 + $0x98] sm:$0xf]
    %v2682 = vld [vmem:[#allocation11 + $0x9c] sm:$0xf]
    %v2683 = vld [vmem:[#allocation11 + $0xa0] sm:$0xf]
    %v2684 = vld [vmem:[#allocation11 + $0xa4] sm:$0xf]
    %v2685 = vld [vmem:[#allocation11 + $0xa8] sm:$0xf]
    %v2686 = vld [vmem:[#allocation11 + $0xac] sm:$0xf]
    %v2687 = vld [vmem:[#allocation11 + $0xb0] sm:$0xf]
    %v2688 = vld [vmem:[#allocation11 + $0xb4] sm:$0xf]
    %v2689 = vld [vmem:[#allocation11 + $0xb8] sm:$0xf]
    %v2690 = vld [vmem:[#allocation11 + $0xbc] sm:$0xf]
    %v2691 = vld [vmem:[#allocation11 + $0xc0] sm:$0xf]
    %v2692 = vld [vmem:[#allocation11 + $0xc4] sm:$0xf]
    %v2693 = vld [vmem:[#allocation11 + $0xc8] sm:$0xf]
    %v2694 = vld [vmem:[#allocation11 + $0xcc] sm:$0xf]
    %v2695 = vld [vmem:[#allocation11 + $0xd0] sm:$0xf]
    %v2696 = vld [vmem:[#allocation11 + $0xd4] sm:$0xf]
    %v2697 = vld [vmem:[#allocation11 + $0xd8] sm:$0xf]
    %v2698 = vld [vmem:[#allocation11 + $0xdc] sm:$0xf]
    %v2699 = vld [vmem:[#allocation11 + $0xe0] sm:$0xf]
    %v2700 = vld [vmem:[#allocation11 + $0xe4] sm:$0xf]
    %v2701 = vld [vmem:[#allocation11 + $0xe8] sm:$0xf]
    %v2702 = vld [vmem:[#allocation11 + $0xec] sm:$0xf]
    %v2703 = vld [vmem:[#allocation11 + $0xf0] sm:$0xf]
    %v2704 = vld [vmem:[#allocation11 + $0xf4] sm:$0xf]
    %v2705 = vld [vmem:[#allocation11 + $0xf8] sm:$0xf]
    %v2706 = vld [vmem:[#allocation11 + $0xfc] sm:$0xf]
    %v2707 = vld [vmem:[#allocation13] sm:$0x1]
    %v2709 = vlaneseq
    %v2710 = vshrl.u32 %v2709, 7
    %v2711 = vsub.s32 0, %v2710
    %v2712 = vrot.slane %v2707, %v2711
    %v2778 = vunpack.c.l.b16 %v2643
    %v2779 = vunpack.c.l.b16 %v2644
    %v2780 = vunpack.c.l.b16 %v2645
    %v2781 = vunpack.c.l.b16 %v2646
    %v2782 = vunpack.c.l.b16 %v2647
    %v2783 = vunpack.c.l.b16 %v2648
    %v2784 = vunpack.c.l.b16 %v2649
    %v2785 = vunpack.c.l.b16 %v2650
    %v2786 = vunpack.c.l.b16 %v2651
    %v2787 = vunpack.c.l.b16 %v2652
    %v2788 = vunpack.c.l.b16 %v2653
    %v2789 = vunpack.c.l.b16 %v2654
    %v2790 = vunpack.c.l.b16 %v2655
    %v2791 = vunpack.c.l.b16 %v2656
    %v2792 = vunpack.c.l.b16 %v2657
    %v2793 = vunpack.c.l.b16 %v2658
    %v2794 = vunpack.c.l.b16 %v2659
    %v2795 = vunpack.c.l.b16 %v2660
    %v2796 = vunpack.c.l.b16 %v2661
    %v2797 = vunpack.c.l.b16 %v2662
    %v2798 = vunpack.c.l.b16 %v2663
    %v2799 = vunpack.c.l.b16 %v2664
    %v2800 = vunpack.c.l.b16 %v2665
    %v2801 = vunpack.c.l.b16 %v2666
    %v2802 = vunpack.c.l.b16 %v2667
    %v2803 = vunpack.c.l.b16 %v2668
    %v2804 = vunpack.c.l.b16 %v2669
    %v2805 = vunpack.c.l.b16 %v2670
    %v2806 = vunpack.c.l.b16 %v2671
    %v2807 = vunpack.c.l.b16 %v2672
    %v2808 = vunpack.c.l.b16 %v2673
    %v2809 = vunpack.c.l.b16 %v2674
    %v2810 = vunpack.c.l.b16 %v2675
    %v2811 = vunpack.c.l.b16 %v2676
    %v2812 = vunpack.c.l.b16 %v2677
    %v2813 = vunpack.c.l.b16 %v2678
    %v2814 = vunpack.c.l.b16 %v2679
    %v2815 = vunpack.c.l.b16 %v2680
    %v2816 = vunpack.c.l.b16 %v2681
    %v2817 = vunpack.c.l.b16 %v2682
    %v2818 = vunpack.c.l.b16 %v2683
    %v2819 = vunpack.c.l.b16 %v2684
    %v2820 = vunpack.c.l.b16 %v2685
    %v2821 = vunpack.c.l.b16 %v2686
    %v2822 = vunpack.c.l.b16 %v2687
    %v2823 = vunpack.c.l.b16 %v2688
    %v2824 = vunpack.c.l.b16 %v2689
    %v2825 = vunpack.c.l.b16 %v2690
    %v2826 = vunpack.c.l.b16 %v2691
    %v2827 = vunpack.c.l.b16 %v2692
    %v2828 = vunpack.c.l.b16 %v2693
    %v2829 = vunpack.c.l.b16 %v2694
    %v2830 = vunpack.c.l.b16 %v2695
    %v2831 = vunpack.c.l.b16 %v2696
    %v2832 = vunpack.c.l.b16 %v2697
    %v2833 = vunpack.c.l.b16 %v2698
    %v2834 = vunpack.c.l.b16 %v2699
    %v2835 = vunpack.c.l.b16 %v2700
    %v2836 = vunpack.c.l.b16 %v2701
    %v2837 = vunpack.c.l.b16 %v2702
    %v2838 = vunpack.c.l.b16 %v2703
    %v2839 = vunpack.c.l.b16 %v2704
    %v2840 = vunpack.c.l.b16 %v2705
    %v2841 = vunpack.c.l.b16 %v2706
    %v2842 = vpack.c.b16 %v2779, %v2778
    %v2843 = vpack.c.b16 %v2781, %v2780
    %v2844 = vpack.c.b16 %v2783, %v2782
    %v2845 = vpack.c.b16 %v2785, %v2784
    %v2846 = vpack.c.b16 %v2787, %v2786
    %v2847 = vpack.c.b16 %v2789, %v2788
    %v2848 = vpack.c.b16 %v2791, %v2790
    %v2849 = vpack.c.b16 %v2793, %v2792
    %v2850 = vpack.c.b16 %v2795, %v2794
    %v2851 = vpack.c.b16 %v2797, %v2796
    %v2852 = vpack.c.b16 %v2799, %v2798
    %v2853 = vpack.c.b16 %v2801, %v2800
    %v2854 = vpack.c.b16 %v2803, %v2802
    %v2855 = vpack.c.b16 %v2805, %v2804
    %v2856 = vpack.c.b16 %v2807, %v2806
    %v2857 = vpack.c.b16 %v2809, %v2808
    %v2858 = vpack.c.b16 %v2811, %v2810
    %v2859 = vpack.c.b16 %v2813, %v2812
    %v2860 = vpack.c.b16 %v2815, %v2814
    %v2861 = vpack.c.b16 %v2817, %v2816
    %v2862 = vpack.c.b16 %v2819, %v2818
    %v2863 = vpack.c.b16 %v2821, %v2820
    %v2864 = vpack.c.b16 %v2823, %v2822
    %v2865 = vpack.c.b16 %v2825, %v2824
    %v2866 = vpack.c.b16 %v2827, %v2826
    %v2867 = vpack.c.b16 %v2829, %v2828
    %v2868 = vpack.c.b16 %v2831, %v2830
    %v2869 = vpack.c.b16 %v2833, %v2832
    %v2870 = vpack.c.b16 %v2835, %v2834
    %v2871 = vpack.c.b16 %v2837, %v2836
    %v2872 = vpack.c.b16 %v2839, %v2838
    %v2873 = vpack.c.b16 %v2841, %v2840
    %2906 = vmatprep.subr.bf16.mxu0 0
    %2907 = vmatpush1.bf16.msra.mxu0 %v2842
    %2908 = vmatprep.subr.bf16.mxu0 0
    %2909 = vmatpush1.bf16.msra.mxu0 %v2843
    %2910 = vmatprep.subr.bf16.mxu0 0
    %2911 = vmatpush1.bf16.msra.mxu0 %v2844
    %2912 = vmatprep.subr.bf16.mxu0 0
    %2913 = vmatpush1.bf16.msra.mxu0 %v2845
    %2914 = vmatprep.subr.bf16.mxu0 0
    %2915 = vmatpush1.bf16.msra.mxu0 %v2846
    %2916 = vmatprep.subr.bf16.mxu0 0
    %2917 = vmatpush1.bf16.msra.mxu0 %v2847
    %2918 = vmatprep.subr.bf16.mxu0 0
    %2919 = vmatpush1.bf16.msra.mxu0 %v2848
    %2920 = vmatprep.subr.bf16.mxu0 0
    %2921 = vmatpush1.bf16.msra.mxu0 %v2849
    %2922 = vmatprep.subr.bf16.mxu0 0
    %2923 = vmatpush1.bf16.msra.mxu0 %v2850
    %2924 = vmatprep.subr.bf16.mxu0 0
    %2925 = vmatpush1.bf16.msra.mxu0 %v2851
    %2926 = vmatprep.subr.bf16.mxu0 0
    %2927 = vmatpush1.bf16.msra.mxu0 %v2852
    %2928 = vmatprep.subr.bf16.mxu0 0
    %2929 = vmatpush1.bf16.msra.mxu0 %v2853
    %2930 = vmatprep.subr.bf16.mxu0 0
    %2931 = vmatpush1.bf16.msra.mxu0 %v2854
    %2932 = vmatprep.subr.bf16.mxu0 0
    %2933 = vmatpush1.bf16.msra.mxu0 %v2855
    %2934 = vmatprep.subr.bf16.mxu0 0
    %2935 = vmatpush1.bf16.msra.mxu0 %v2856
    %2936 = vmatprep.subr.bf16.mxu0 0
    %2937 = vmatpush1.bf16.msra.mxu0 %v2857
    %2938 = vmatprep.mubr.bf16.mxu0 %v2640
    %2939 = vmatmul.mubr.bf16.gmra.mrb[0].mxu0 %v2639
    %v2940 = vpop.f32.mrb[0].mxu0
    %v2941 = vadd.f32 %v2712, %v2940
    %v2942 = vpop.f32.mrb[0].mxu0
    %v2943 = vpop.f32.mrb[0].mxu0
    %v2944 = vpop.f32.mrb[0].mxu0
    %2945 = vdwg.mxu0
    %2946 = vmatprep.subr.bf16.mxu0 0
    %2947 = vmatpush1.bf16.msra.mxu0 %v2858
    %2948 = vmatprep.subr.bf16.mxu0 0
    %2949 = vmatpush1.bf16.msra.mxu0 %v2859
    %2950 = vmatprep.subr.bf16.mxu0 0
    %2951 = vmatpush1.bf16.msra.mxu0 %v2860
    %2952 = vmatprep.subr.bf16.mxu0 0
    %2953 = vmatpush1.bf16.msra.mxu0 %v2861
    %2954 = vmatprep.subr.bf16.mxu0 0
    %2955 = vmatpush1.bf16.msra.mxu0 %v2862
    %2956 = vmatprep.subr.bf16.mxu0 0
    %2957 = vmatpush1.bf16.msra.mxu0 %v2863
    %2958 = vmatprep.subr.bf16.mxu0 0
    %2959 = vmatpush1.bf16.msra.mxu0 %v2864
    %2960 = vmatprep.subr.bf16.mxu0 0
    %2961 = vmatpush1.bf16.msra.mxu0 %v2865
    %2962 = vmatprep.subr.bf16.mxu0 0
    %2963 = vmatpush1.bf16.msra.mxu0 %v2866
    %2964 = vmatprep.subr.bf16.mxu0 0
    %2965 = vmatpush1.bf16.msra.mxu0 %v2867
    %2966 = vmatprep.subr.bf16.mxu0 0
    %2967 = vmatpush1.bf16.msra.mxu0 %v2868
    %2968 = vmatprep.subr.bf16.mxu0 0
    %2969 = vmatpush1.bf16.msra.mxu0 %v2869
    %2970 = vmatprep.subr.bf16.mxu0 0
    %2971 = vmatpush1.bf16.msra.mxu0 %v2870
    %2972 = vmatprep.subr.bf16.mxu0 0
    %2973 = vmatpush1.bf16.msra.mxu0 %v2871
    %2974 = vmatprep.subr.bf16.mxu0 0
    %2975 = vmatpush1.bf16.msra.mxu0 %v2872
    %2976 = vmatprep.subr.bf16.mxu0 0
    %2977 = vmatpush1.bf16.msra.mxu0 %v2873
    %2978 = vmatprep.mubr.bf16.mxu0 %v2642
    %2979 = vmatmul.mubr.bf16.gmra.mrb[0].mxu0 %v2641
    %v2980 = vpop.f32.mrb[0].mxu0
    %v2981 = vadd.f32 %v2941, %v2980
    %v2982 = vpop.f32.mrb[0].mxu0
    %v2983 = vpop.f32.mrb[0].mxu0
    %v2984 = vpop.f32.mrb[0].mxu0
    %2985 = vdwg.mxu0
    %2986 = vst [vmem:[#allocation14] sm:$0xff] %v2981
    // Predicated region
    $region58: #{neural_network_forward.1} parent=1 // pred_check
      _
    $region59: #{neural_network_forward.1} parent=1 // pred_check_branch
      %2988 = sbr.rel (0) target = $region61
    $region60: #{neural_network_forward.1} parent=1 // pred_region
      %s2990 = ssub.s32 128, 128
      %2991 = vsyncadd [#allocation4], %s2990
      %s2993 = sshll.u32 [#allocation14], 4
      %s2994 = int_to_ptr.vmem [resolvable:$true] %s2993
      %2996 = dma.vmem_to_hbm [thread:$0]  %s2994, 128, %s7, [#allocation4]
    $region61: #{neural_network_forward.1} parent=1 // pred_fallthru
      _
    // Predicated region
    $region62: #{neural_network_forward.1} parent=1 // pred_check
      _
    $region63: #{neural_network_forward.1} parent=1 // pred_check_branch
      %2998 = sbr.rel (0) target = $region65
    $region64: #{neural_network_forward.1} parent=1 // pred_region
      %2999 = dma.done [#allocation4], 128
    $region65: #{neural_network_forward.1} parent=1 // pred_fallthru
      _
    %3000 = vsyncpa [#allocation3], 1
    %3001 = vsyncpa [#allocation6], 1
    %3002 = vsyncpa [#allocation9], 1
    %3003 = vsyncpa [#allocation12], 1
    %3004 = vsyncpa [#allocation4], 1

</llo_original>
